<compile_context>
chip_gen: v7x
topology: tpu7x:2x2x1
jax: 0.10.0
libtpu: 0.0.40
codegen_flags: <defaults>
</compile_context>

<pallas_src>
import jax
import jax.numpy as jnp
from jax import lax
from jax.experimental import pallas as pl
from jax.experimental.pallas import tpu as pltpu

LANE = 128
SUBLANE = 8
COMPUTE_DTYPE = jnp.bfloat16  # MXU operand dtype; accumulation stays f32.


def _round_up(x, m):
    return (x + m - 1) // m * m


def _pad2(a, rows, cols):
    """Zero-pad a 2-D array up to (rows, cols)."""
    return jnp.pad(a, ((0, rows - a.shape[0]), (0, cols - a.shape[1])))


# ----------------------------------------------------------------------------
# Fused multi-layer RNN kernel (one pallas_call for all layers & timesteps).
# ----------------------------------------------------------------------------
def _make_fused_rnn_kernel(num_layers, seq_len, b_blk, hidden, compute_dtype):
    def kernel(*refs):
        # refs: x, (w_ih, w_hh, bias) * L, out, proj_scratch, acts_scratch, h_scratch
        x_ref = refs[0]                              # (T, b_blk, E_pad)  compute_dtype
        layer_refs = refs[1:1 + 3 * num_layers]
        out_ref = refs[1 + 3 * num_layers]           # (b_blk, H_pad)     f32
        proj_ref = refs[2 + 3 * num_layers]          # (T, b_blk, H_pad)  f32 scratch
        acts_ref = refs[3 + 3 * num_layers]          # (T, b_blk, H_pad)  f32 scratch
        h_ref = refs[4 + 3 * num_layers]             # (b_blk, H_pad)     f32 scratch

        for layer in range(num_layers):
            w_ih_ref, w_hh_ref, b_ref = layer_refs[3 * layer:3 * layer + 3]
            is_first = layer == 0
            is_last = layer == num_layers - 1

            # --- Hoisted input projection: one big (T*B, K) @ (K, H) MXU matmul.
            inp = (x_ref[...] if is_first else acts_ref[...]).astype(compute_dtype)
            k_dim = inp.shape[-1]
            proj = jnp.dot(inp.reshape(seq_len * b_blk, k_dim), w_ih_ref[...],
                           preferred_element_type=jnp.float32)
            proj = proj + b_ref[...]   # bias broadcast hoisted out of the time loop
            proj_ref[...] = proj.reshape(seq_len, b_blk, hidden)

            # --- Sequential recurrence: only h @ W_hh remains on the critical path.
            h_ref[...] = jnp.zeros_like(h_ref)       # hidden=None -> zero init
            w_hh = w_hh_ref[...]                     # hoisted weight load

            def step(t, carry, _is_last=is_last, _w_hh=w_hh):
                h_new = jnp.tanh(
                    proj_ref[t]
                    + jnp.dot(h_ref[...].astype(compute_dtype), _w_hh,
                              preferred_element_type=jnp.float32))
                h_ref[...] = h_new
                if not _is_last:                     # last layer only needs final h
                    acts_ref[t] = h_new
                return carry

            lax.fori_loop(0, seq_len, step, 0, unroll=(seq_len <= 32))

        out_ref[...] = h_ref[...].astype(out_ref.dtype)

    return kernel


def rnn_forward_fused(x_tbe, layer_params, *, compute_dtype=COMPUTE_DTYPE):
    """x_tbe: (T, B_pad, E_pad) compute_dtype, time-major.
    layer_params: list of dicts with padded 'w_ih' (K, H_pad), 'w_hh' (H_pad, H_pad)
    in compute_dtype and 'bias' (1, H_pad) f32.
    Returns (B_pad, H_pad) f32: last-timestep hidden state of the last layer."""
    T, B_pad, E_pad = x_tbe.shape
    H_pad = layer_params[0]["w_hh"].shape[0]
    num_layers = len(layer_params)

    # Split the batch into 2 independent blocks when possible so the "parallel"
    # grid axis can be sharded across both TensorCores on v7x.
    b_blk = B_pad // 2 if B_pad >= 16 else B_pad
    n_b = B_pad // b_blk

    in_specs = [pl.BlockSpec((T, b_blk, E_pad), lambda i: (0, i, 0))]
    args = [x_tbe]
    for lp in layer_params:
        k_in = lp["w_ih"].shape[0]
        in_specs += [
            pl.BlockSpec((k_in, H_pad), lambda i: (0, 0)),
            pl.BlockSpec((H_pad, H_pad), lambda i: (0, 0)),
            pl.BlockSpec((1, H_pad), lambda i: (0, 0)),
        ]
        args += [lp["w_ih"], lp["w_hh"], lp["bias"]]

    scratch_shapes = [
        pltpu.VMEM((T, b_blk, H_pad), jnp.float32),   # hoisted input projections
        pltpu.VMEM((T, b_blk, H_pad), jnp.float32),   # layer-to-layer activations
        pltpu.VMEM((b_blk, H_pad), jnp.float32),      # recurrent hidden state
    ]

    # Explicit VMEM budget, sized conservatively for v7x's 64 MiB per-TC VMEM
    # (constant-index weight blocks are still double-buffered by default).
    w_bytes = sum(int(lp[k].size) * lp[k].dtype.itemsize
                  for lp in layer_params for k in ("w_ih", "w_hh", "bias"))
    x_bytes = T * b_blk * E_pad * x_tbe.dtype.itemsize
    out_bytes = b_blk * H_pad * 4
    scratch_bytes = (2 * T * b_blk * H_pad + b_blk * H_pad) * 4
    need = 2 * (x_bytes + out_bytes + w_bytes) + scratch_bytes
    vmem_limit = int(min(max(2 * need, 4 << 20), 64 << 20))

    kernel = _make_fused_rnn_kernel(num_layers, T, b_blk, H_pad, compute_dtype)

    return pl.pallas_call(
        kernel,
        out_shape=jax.ShapeDtypeStruct((B_pad, H_pad), jnp.float32),
        grid=(n_b,),
        in_specs=in_specs,
        out_specs=pl.BlockSpec((b_blk, H_pad), lambda i: (i, 0)),
        scratch_shapes=scratch_shapes,
        compiler_params=pltpu.CompilerParams(
            dimension_semantics=("parallel",),   # batch blocks are independent
            vmem_limit_bytes=vmem_limit,
        ),
    )(*args)


# ----------------------------------------------------------------------------
# Final Linear, tiled over the vocab dimension (lane-dense tiles, parallel grid).
# ----------------------------------------------------------------------------
def _fc_kernel(x_ref, w_ref, b_ref, o_ref):
    o_ref[...] = (
        jnp.dot(x_ref[...].astype(w_ref.dtype), w_ref[...],
                preferred_element_type=jnp.float32)
        + b_ref[...]
    ).astype(o_ref.dtype)


def fc(x, w, b):
    """x: (B_pad, H_pad) f32; w: (H_pad, V_pad) compute dtype; b: (1, V_pad) f32."""
    B_pad, H_pad = x.shape
    V_pad = w.shape[1]
    tn = next(t for t in (1024, 512, 256, 128) if V_pad % t == 0)
    return pl.pallas_call(
        _fc_kernel,
        out_shape=jax.ShapeDtypeStruct((B_pad, V_pad), jnp.float32),
        grid=(V_pad // tn,),
        in_specs=[
            pl.BlockSpec((B_pad, H_pad), lambda j: (0, 0)),
            pl.BlockSpec((H_pad, tn), lambda j: (0, j)),
            pl.BlockSpec((1, tn), lambda j: (0, j)),
        ],
        out_specs=pl.BlockSpec((B_pad, tn), lambda j: (0, j)),
        compiler_params=pltpu.CompilerParams(
            dimension_semantics=("parallel",),
        ),
    )(x, w, b)


# ----------------------------------------------------------------------------
# Full model forward
# ----------------------------------------------------------------------------
def rnn_model_forward(tokens, params, compute_dtype=COMPUTE_DTYPE):
    """tokens: (B, T) int32 -> logits (B, vocab_size) f32."""
    B, T = tokens.shape
    emb = params["embedding"]
    vocab_size, E = emb.shape
    H = params["rnn_layers"][0]["w_hh"].shape[0]
    V_out = params["fc_w"].shape[1]

    E_pad = _round_up(E, LANE)
    H_pad = _round_up(H, LANE)
    V_pad = _round_up(V_out, LANE)
    B_pad = _round_up(B, SUBLANE)
    if B_pad >= 16:
        B_pad = _round_up(B_pad, 16)   # even 2-way split across TensorCores (v7x)

    # Embedding lookup (plain-JAX gather) produced directly in time-major layout,
    # so no separate HBM transpose pass over the activations is needed.
    emb_p = _pad2(emb, vocab_size, E_pad)
    tok_p = jnp.pad(tokens, ((0, B_pad - B), (0, 0)))
    x_tbe = jnp.take(emb_p, tok_p.T, axis=0).astype(compute_dtype)  # (T, B_pad, E_pad)

    # Pad + cast weights once (zero padding keeps padded hidden lanes exactly 0).
    layers = []
    for l, lp in enumerate(params["rnn_layers"]):
        k_in = E_pad if l == 0 else H_pad
        layers.append({
            "w_ih": _pad2(lp["w_ih"], k_in, H_pad).astype(compute_dtype),
            "w_hh": _pad2(lp["w_hh"], H_pad, H_pad).astype(compute_dtype),
            "bias": _pad2(lp["bias"], 1, H_pad).astype(jnp.float32),
        })

    last_h = rnn_forward_fused(x_tbe, layers, compute_dtype=compute_dtype)  # (B_pad, H_pad)

    fc_w = _pad2(params["fc_w"], H_pad, V_pad).astype(compute_dtype)
    fc_b = _pad2(params["fc_b"], 1, V_pad).astype(jnp.float32)
    logits = fc(last_h, fc_w, fc_b)                                         # (B_pad, V_pad)
    return logits[:B, :V_out]


def init_params(key, vocab_size, embed_size, hidden_size, num_layers):
    keys = jax.random.split(key, 3 + 4 * num_layers)
    k_emb, k_fc_w, k_fc_b = keys[0], keys[1], keys[2]
    lkeys = keys[3:]

    params = {}
    # nn.Embedding: N(0, 1)
    params["embedding"] = jax.random.normal(
        k_emb, (vocab_size, embed_size), dtype=jnp.float32
    )

    # nn.RNN: uniform(-1/sqrt(H), 1/sqrt(H)); weights stored pre-transposed so the
    # kernel computes x @ W_ih (E,H) and h @ W_hh (H,H); biases pre-summed.
    bound = 1.0 / jnp.sqrt(hidden_size)
    layers = []
    for l in range(num_layers):
        in_size = embed_size if l == 0 else hidden_size
        w_ih = jax.random.uniform(
            lkeys[4 * l + 0], (in_size, hidden_size), jnp.float32, -bound, bound
        )
        w_hh = jax.random.uniform(
            lkeys[4 * l + 1], (hidden_size, hidden_size), jnp.float32, -bound, bound
        )
        b_ih = jax.random.uniform(
            lkeys[4 * l + 2], (1, hidden_size), jnp.float32, -bound, bound
        )
        b_hh = jax.random.uniform(
            lkeys[4 * l + 3], (1, hidden_size), jnp.float32, -bound, bound
        )
        layers.append({"w_ih": w_ih, "w_hh": w_hh, "bias": b_ih + b_hh})
    params["rnn_layers"] = layers

    # nn.Linear(hidden_size, vocab_size): uniform(-1/sqrt(H), 1/sqrt(H))
    params["fc_w"] = jax.random.uniform(
        k_fc_w, (hidden_size, vocab_size), jnp.float32, -bound, bound
    )
    params["fc_b"] = jax.random.uniform(
        k_fc_b, (1, vocab_size), jnp.float32, -bound, bound
    )
    return params


# Pure-JAX reference using the same dtype discipline (bf16 matmul operands,
# f32 accumulation / elementwise) for a tight sanity check.
def rnn_model_reference(tokens, params, compute_dtype=COMPUTE_DTYPE):
    cdt = compute_dtype
    x = jnp.take(params["embedding"], tokens, axis=0)  # (B, T, E) f32
    B, T, _ = x.shape
    layer_in = x
    for layer in params["rnn_layers"]:
        w_ih = layer["w_ih"].astype(cdt)
        w_hh = layer["w_hh"].astype(cdt)
        bias = layer["bias"]
        H = w_hh.shape[1]
        h = jnp.zeros((B, H), jnp.float32)
        outs = []
        for t in range(T):
            pre = (
                jnp.dot(layer_in[:, t, :].astype(cdt), w_ih,
                        preferred_element_type=jnp.float32)
                + bias
                + jnp.dot(h.astype(cdt), w_hh, preferred_element_type=jnp.float32)
            )
            h = jnp.tanh(pre)
            outs.append(h)
        layer_in = jnp.stack(outs, axis=1)  # (B, T, H)
    last = layer_in[:, -1, :]
    return (jnp.dot(last.astype(cdt), params["fc_w"].astype(cdt),
                    preferred_element_type=jnp.float32)
            + params["fc_b"])


if __name__ == "__main__":
    vocab_size, embed_size, hidden_size, num_layers = 64, 32, 32, 2
    batch, seq = 2, 8

    key = jax.random.PRNGKey(0)
    k_params, k_tokens = jax.random.split(key)
    params = init_params(k_params, vocab_size, embed_size, hidden_size, num_layers)
    tokens = jax.random.randint(k_tokens, (batch, seq), 0, vocab_size, dtype=jnp.int32)

    fwd = jax.jit(rnn_model_forward)
    logits = jax.block_until_ready(fwd(tokens, params))

    ref = rnn_model_reference(tokens, params)
    assert logits.shape == (batch, vocab_size)
    max_err = float(jnp.max(jnp.abs(logits - ref)))
    assert jnp.allclose(logits, ref, atol=5e-3, rtol=5e-3), f"max abs err {max_err}"

    print("KERNEL_OK")
</pallas_src>

<mosaic_0001>
module attributes {stable_mosaic.version = 11 : i64} {
  func.func @_fc_kernel(%arg0: i32, %arg1: memref<8x128xf32, #tpu.memory_space<vmem>>, %arg2: memref<128x128xbf16, #tpu.memory_space<vmem>>, %arg3: memref<1x128xf32, #tpu.memory_space<vmem>>, %arg4: memref<8x128xf32, #tpu.memory_space<vmem>>) attributes {dimension_semantics = [#tpu.dimension_semantics<parallel>], iteration_bounds = array<i64: 1>, scalar_prefetch = 0 : i64, scratch_operands = 0 : i64, tpu.core_type = #tpu.core_type<tc>, window_params = [{pipeline_mode = #tpu.pipeline_mode<synchronous>, transform_indices = @transform_0, window_bounds = array<i64: 8, 128>}, {transform_indices = @transform_1, window_bounds = array<i64: 128, 128>}, {transform_indices = @transform_2, window_bounds = array<i64: 1, 128>}, {transform_indices = @transform_3, window_bounds = array<i64: 8, 128>}]} {
    %c0 = arith.constant 0 : index
    %c0_0 = arith.constant 0 : index
    %0 = vector.load %arg1[%c0, %c0_0] : memref<8x128xf32, #tpu.memory_space<vmem>>, vector<8x128xf32>
    %1 = arith.truncf %0 : vector<8x128xf32> to vector<8x128xbf16>
    %c0_1 = arith.constant 0 : index
    %c0_2 = arith.constant 0 : index
    %2 = vector.load %arg2[%c0_1, %c0_2] : memref<128x128xbf16, #tpu.memory_space<vmem>>, vector<128x128xbf16>
    %cst = arith.constant dense<0.000000e+00> : vector<8x128xf32>
    %3 = tpu.matmul %1, %2, %cst {dimension_numbers = #tpu.dot_dimension_numbers<[1], [0], [0], [1], [0, 0, 1, 1], [], []>} : vector<8x128xbf16>, vector<128x128xbf16>, vector<8x128xf32> -> vector<8x128xf32>
    %c0_3 = arith.constant 0 : index
    %c0_4 = arith.constant 0 : index
    %4 = vector.load %arg3[%c0_3, %c0_4] : memref<1x128xf32, #tpu.memory_space<vmem>>, vector<1x128xf32>
    %5 = vector.broadcast %4 : vector<1x128xf32> to vector<8x128xf32>
    %6 = arith.addf %3, %5 : vector<8x128xf32>
    %c0_5 = arith.constant 0 : index
    %c0_6 = arith.constant 0 : index
    %7 = vector.load %arg4[%c0_5, %c0_6] : memref<8x128xf32, #tpu.memory_space<vmem>>, vector<8x128xf32>
    tpu.vector_store %arg4[%c0_5, %c0_6], %6 {strides = array<i32>} : memref<8x128xf32, #tpu.memory_space<vmem>>, vector<8x128xf32>,
    return
  }
  func.func @transform_0(%arg0: i32) -> (i32, i32) {
    %c0_i32 = arith.constant 0 : i32
    %c0_i32_0 = arith.constant 0 : i32
    %c0_i32_1 = arith.constant 0 : i32
    return %c0_i32, %c0_i32_0 : i32, i32
  }
  func.func @transform_1(%arg0: i32) -> (i32, i32) {
    %c0_i32 = arith.constant 0 : i32
    %c0_i32_0 = arith.constant 0 : i32
    return %c0_i32, %arg0 : i32, i32
  }
  func.func @transform_2(%arg0: i32) -> (i32, i32) {
    %c0_i32 = arith.constant 0 : i32
    %c0_i32_0 = arith.constant 0 : i32
    return %c0_i32, %arg0 : i32, i32
  }
  func.func @transform_3(%arg0: i32) -> (i32, i32) {
    %c0_i32 = arith.constant 0 : i32
    %c0_i32_0 = arith.constant 0 : i32
    return %c0_i32, %arg0 : i32, i32
  }
}

module attributes {stable_mosaic.version = 11 : i64} {
  func.func @kernel(%arg0: i32, %arg1: memref<8x8x128xbf16, #tpu.memory_space<vmem>>, %arg2: memref<128x128xbf16, #tpu.memory_space<vmem>>, %arg3: memref<128x128xbf16, #tpu.memory_space<vmem>>, %arg4: memref<1x128xf32, #tpu.memory_space<vmem>>, %arg5: memref<128x128xbf16, #tpu.memory_space<vmem>>, %arg6: memref<128x128xbf16, #tpu.memory_space<vmem>>, %arg7: memref<1x128xf32, #tpu.memory_space<vmem>>, %arg8: memref<8x128xf32, #tpu.memory_space<vmem>>, %arg9: memref<8x8x128xf32, #tpu.memory_space<vmem>>, %arg10: memref<8x8x128xf32, #tpu.memory_space<vmem>>, %arg11: memref<8x128xf32, #tpu.memory_space<vmem>>) attributes {dimension_semantics = [#tpu.dimension_semantics<parallel>], iteration_bounds = array<i64: 1>, scalar_prefetch = 0 : i64, scratch_operands = 3 : i64, tpu.core_type = #tpu.core_type<tc>, window_params = [{transform_indices = @transform_0, window_bounds = array<i64: 8, 8, 128>}, {pipeline_mode = #tpu.pipeline_mode<synchronous>, transform_indices = @transform_1, window_bounds = array<i64: 128, 128>}, {pipeline_mode = #tpu.pipeline_mode<synchronous>, transform_indices = @transform_2, window_bounds = array<i64: 128, 128>}, {pipeline_mode = #tpu.pipeline_mode<synchronous>, transform_indices = @transform_3, window_bounds = array<i64: 1, 128>}, {pipeline_mode = #tpu.pipeline_mode<synchronous>, transform_indices = @transform_4, window_bounds = array<i64: 128, 128>}, {pipeline_mode = #tpu.pipeline_mode<synchronous>, transform_indices = @transform_5, window_bounds = array<i64: 128, 128>}, {pipeline_mode = #tpu.pipeline_mode<synchronous>, transform_indices = @transform_6, window_bounds = array<i64: 1, 128>}, {transform_indices = @transform_7, window_bounds = array<i64: 8, 128>}]} {
    %c0 = arith.constant 0 : index
    %c0_0 = arith.constant 0 : index
    %c0_1 = arith.constant 0 : index
    %0 = vector.load %arg1[%c0, %c0_0, %c0_1] : memref<8x8x128xbf16, #tpu.memory_space<vmem>>, vector<8x8x128xbf16>
    %1 = vector.shape_cast %0 : vector<8x8x128xbf16> to vector<64x128xbf16>
    %c0_2 = arith.constant 0 : index
    %c0_3 = arith.constant 0 : index
    %2 = vector.load %arg2[%c0_2, %c0_3] : memref<128x128xbf16, #tpu.memory_space<vmem>>, vector<128x128xbf16>
    %cst = arith.constant dense<0.000000e+00> : vector<64x128xf32>
    %3 = tpu.matmul %1, %2, %cst {dimension_numbers = #tpu.dot_dimension_numbers<[1], [0], [0], [1], [0, 0, 1, 1], [], []>} : vector<64x128xbf16>, vector<128x128xbf16>, vector<64x128xf32> -> vector<64x128xf32>
    %c0_4 = arith.constant 0 : index
    %c0_5 = arith.constant 0 : index
    %4 = vector.load %arg4[%c0_4, %c0_5] : memref<1x128xf32, #tpu.memory_space<vmem>>, vector<1x128xf32>
    %5 = vector.broadcast %4 : vector<1x128xf32> to vector<64x128xf32>
    %6 = arith.addf %3, %5 : vector<64x128xf32>
    %7 = vector.shape_cast %6 : vector<64x128xf32> to vector<8x8x128xf32>
    %c0_6 = arith.constant 0 : index
    %c0_7 = arith.constant 0 : index
    %c0_8 = arith.constant 0 : index
    %8 = vector.load %arg9[%c0_6, %c0_7, %c0_8] : memref<8x8x128xf32, #tpu.memory_space<vmem>>, vector<8x8x128xf32>
    tpu.vector_store %arg9[%c0_6, %c0_7, %c0_8], %7 {strides = array<i32>} : memref<8x8x128xf32, #tpu.memory_space<vmem>>, vector<8x8x128xf32>,
    %cst_9 = arith.constant 0.000000e+00 : f32
    %9 = vector.broadcast %cst_9 : f32 to vector<8x128xf32>
    %c0_10 = arith.constant 0 : index
    %c0_11 = arith.constant 0 : index
    %10 = vector.load %arg11[%c0_10, %c0_11] : memref<8x128xf32, #tpu.memory_space<vmem>>, vector<8x128xf32>
    tpu.vector_store %arg11[%c0_10, %c0_11], %9 {strides = array<i32>} : memref<8x128xf32, #tpu.memory_space<vmem>>, vector<8x128xf32>,
    %c0_12 = arith.constant 0 : index
    %c0_13 = arith.constant 0 : index
    %11 = vector.load %arg3[%c0_12, %c0_13] : memref<128x128xbf16, #tpu.memory_space<vmem>>, vector<128x128xbf16>
    %c0_i32 = arith.constant 0 : i32
    %12 = arith.index_cast %c0_i32 : i32 to index
    %c0_14 = arith.constant 0 : index
    %c0_15 = arith.constant 0 : index
    %13 = vector.load %arg9[%12, %c0_14, %c0_15] : memref<8x8x128xf32, #tpu.memory_space<vmem>>, vector<1x8x128xf32>
    %14 = vector.shape_cast %13 : vector<1x8x128xf32> to vector<8x128xf32>
    %c0_16 = arith.constant 0 : index
    %c0_17 = arith.constant 0 : index
    %15 = vector.load %arg11[%c0_16, %c0_17] : memref<8x128xf32, #tpu.memory_space<vmem>>, vector<8x128xf32>
    %16 = arith.truncf %15 : vector<8x128xf32> to vector<8x128xbf16>
    %cst_18 = arith.constant dense<0.000000e+00> : vector<8x128xf32>
    %17 = tpu.matmul %16, %11, %cst_18 {dimension_numbers = #tpu.dot_dimension_numbers<[1], [0], [0], [1], [0, 0, 1, 1], [], []>} : vector<8x128xbf16>, vector<128x128xbf16>, vector<8x128xf32> -> vector<8x128xf32>
    %18 = arith.addf %14, %17 : vector<8x128xf32>
    %19 = math.tanh %18 : vector<8x128xf32>
    %c0_19 = arith.constant 0 : index
    %c0_20 = arith.constant 0 : index
    %20 = vector.load %arg11[%c0_19, %c0_20] : memref<8x128xf32, #tpu.memory_space<vmem>>, vector<8x128xf32>
    tpu.vector_store %arg11[%c0_19, %c0_20], %19 {strides = array<i32>} : memref<8x128xf32, #tpu.memory_space<vmem>>, vector<8x128xf32>,
    %21 = arith.index_cast %c0_i32 : i32 to index
    %c0_21 = arith.constant 0 : index
    %c0_22 = arith.constant 0 : index
    %22 = vector.load %arg10[%21, %c0_21, %c0_22] : memref<8x8x128xf32, #tpu.memory_space<vmem>>, vector<1x8x128xf32>
    %23 = vector.shape_cast %22 : vector<1x8x128xf32> to vector<8x128xf32>
    %24 = vector.shape_cast %19 : vector<8x128xf32> to vector<1x8x128xf32>
    tpu.vector_store %arg10[%21, %c0_21, %c0_22], %24 {strides = array<i32>} : memref<8x8x128xf32, #tpu.memory_space<vmem>>, vector<1x8x128xf32>,
    %c1_i32 = arith.constant 1 : i32
    %25 = arith.index_cast %c1_i32 : i32 to index
    %c0_23 = arith.constant 0 : index
    %c0_24 = arith.constant 0 : index
    %26 = vector.load %arg9[%25, %c0_23, %c0_24] : memref<8x8x128xf32, #tpu.memory_space<vmem>>, vector<1x8x128xf32>
    %27 = vector.shape_cast %26 : vector<1x8x128xf32> to vector<8x128xf32>
    %c0_25 = arith.constant 0 : index
    %c0_26 = arith.constant 0 : index
    %28 = vector.load %arg11[%c0_25, %c0_26] : memref<8x128xf32, #tpu.memory_space<vmem>>, vector<8x128xf32>
    %29 = arith.truncf %28 : vector<8x128xf32> to vector<8x128xbf16>
    %cst_27 = arith.constant dense<0.000000e+00> : vector<8x128xf32>
    %30 = tpu.matmul %29, %11, %cst_27 {dimension_numbers = #tpu.dot_dimension_numbers<[1], [0], [0], [1], [0, 0, 1, 1], [], []>} : vector<8x128xbf16>, vector<128x128xbf16>, vector<8x128xf32> -> vector<8x128xf32>
    %31 = arith.addf %27, %30 : vector<8x128xf32>
    %32 = math.tanh %31 : vector<8x128xf32>
    %c0_28 = arith.constant 0 : index
    %c0_29 = arith.constant 0 : index
    %33 = vector.load %arg11[%c0_28, %c0_29] : memref<8x128xf32, #tpu.memory_space<vmem>>, vector<8x128xf32>
    tpu.vector_store %arg11[%c0_28, %c0_29], %32 {strides = array<i32>} : memref<8x128xf32, #tpu.memory_space<vmem>>, vector<8x128xf32>,
    %34 = arith.index_cast %c1_i32 : i32 to index
    %c0_30 = arith.constant 0 : index
    %c0_31 = arith.constant 0 : index
    %35 = vector.load %arg10[%34, %c0_30, %c0_31] : memref<8x8x128xf32, #tpu.memory_space<vmem>>, vector<1x8x128xf32>
    %36 = vector.shape_cast %35 : vector<1x8x128xf32> to vector<8x128xf32>
    %37 = vector.shape_cast %32 : vector<8x128xf32> to vector<1x8x128xf32>
    tpu.vector_store %arg10[%34, %c0_30, %c0_31], %37 {strides = array<i32>} : memref<8x8x128xf32, #tpu.memory_space<vmem>>, vector<1x8x128xf32>,
    %c2_i32 = arith.constant 2 : i32
    %38 = arith.index_cast %c2_i32 : i32 to index
    %c0_32 = arith.constant 0 : index
    %c0_33 = arith.constant 0 : index
    %39 = vector.load %arg9[%38, %c0_32, %c0_33] : memref<8x8x128xf32, #tpu.memory_space<vmem>>, vector<1x8x128xf32>
    %40 = vector.shape_cast %39 : vector<1x8x128xf32> to vector<8x128xf32>
    %c0_34 = arith.constant 0 : index
    %c0_35 = arith.constant 0 : index
    %41 = vector.load %arg11[%c0_34, %c0_35] : memref<8x128xf32, #tpu.memory_space<vmem>>, vector<8x128xf32>
    %42 = arith.truncf %41 : vector<8x128xf32> to vector<8x128xbf16>
    %cst_36 = arith.constant dense<0.000000e+00> : vector<8x128xf32>
    %43 = tpu.matmul %42, %11, %cst_36 {dimension_numbers = #tpu.dot_dimension_numbers<[1], [0], [0], [1], [0, 0, 1, 1], [], []>} : vector<8x128xbf16>, vector<128x128xbf16>, vector<8x128xf32> -> vector<8x128xf32>
    %44 = arith.addf %40, %43 : vector<8x128xf32>
    %45 = math.tanh %44 : vector<8x128xf32>
    %c0_37 = arith.constant 0 : index
    %c0_38 = arith.constant 0 : index
    %46 = vector.load %arg11[%c0_37, %c0_38] : memref<8x128xf32, #tpu.memory_space<vmem>>, vector<8x128xf32>
    tpu.vector_store %arg11[%c0_37, %c0_38], %45 {strides = array<i32>} : memref<8x128xf32, #tpu.memory_space<vmem>>, vector<8x128xf32>,
    %47 = arith.index_cast %c2_i32 : i32 to index
    %c0_39 = arith.constant 0 : index
    %c0_40 = arith.constant 0 : index
    %48 = vector.load %arg10[%47, %c0_39, %c0_40] : memref<8x8x128xf32, #tpu.memory_space<vmem>>, vector<1x8x128xf32>
    %49 = vector.shape_cast %48 : vector<1x8x128xf32> to vector<8x128xf32>
    %50 = vector.shape_cast %45 : vector<8x128xf32> to vector<1x8x128xf32>
    tpu.vector_store %arg10[%47, %c0_39, %c0_40], %50 {strides = array<i32>} : memref<8x8x128xf32, #tpu.memory_space<vmem>>, vector<1x8x128xf32>,
    %c3_i32 = arith.constant 3 : i32
    %51 = arith.index_cast %c3_i32 : i32 to index
    %c0_41 = arith.constant 0 : index
    %c0_42 = arith.constant 0 : index
    %52 = vector.load %arg9[%51, %c0_41, %c0_42] : memref<8x8x128xf32, #tpu.memory_space<vmem>>, vector<1x8x128xf32>
    %53 = vector.shape_cast %52 : vector<1x8x128xf32> to vector<8x128xf32>
    %c0_43 = arith.constant 0 : index
    %c0_44 = arith.constant 0 : index
    %54 = vector.load %arg11[%c0_43, %c0_44] : memref<8x128xf32, #tpu.memory_space<vmem>>, vector<8x128xf32>
    %55 = arith.truncf %54 : vector<8x128xf32> to vector<8x128xbf16>
    %cst_45 = arith.constant dense<0.000000e+00> : vector<8x128xf32>
    %56 = tpu.matmul %55, %11, %cst_45 {dimension_numbers = #tpu.dot_dimension_numbers<[1], [0], [0], [1], [0, 0, 1, 1], [], []>} : vector<8x128xbf16>, vector<128x128xbf16>, vector<8x128xf32> -> vector<8x128xf32>
    %57 = arith.addf %53, %56 : vector<8x128xf32>
    %58 = math.tanh %57 : vector<8x128xf32>
    %c0_46 = arith.constant 0 : index
    %c0_47 = arith.constant 0 : index
    %59 = vector.load %arg11[%c0_46, %c0_47] : memref<8x128xf32, #tpu.memory_space<vmem>>, vector<8x128xf32>
    tpu.vector_store %arg11[%c0_46, %c0_47], %58 {strides = array<i32>} : memref<8x128xf32, #tpu.memory_space<vmem>>, vector<8x128xf32>,
    %60 = arith.index_cast %c3_i32 : i32 to index
    %c0_48 = arith.constant 0 : index
    %c0_49 = arith.constant 0 : index
    %61 = vector.load %arg10[%60, %c0_48, %c0_49] : memref<8x8x128xf32, #tpu.memory_space<vmem>>, vector<1x8x128xf32>
    %62 = vector.shape_cast %61 : vector<1x8x128xf32> to vector<8x128xf32>
    %63 = vector.shape_cast %58 : vector<8x128xf32> to vector<1x8x128xf32>
    tpu.vector_store %arg10[%60, %c0_48, %c0_49], %63 {strides = array<i32>} : memref<8x8x128xf32, #tpu.memory_space<vmem>>, vector<1x8x128xf32>,
    %c4_i32 = arith.constant 4 : i32
    %64 = arith.index_cast %c4_i32 : i32 to index
    %c0_50 = arith.constant 0 : index
    %c0_51 = arith.constant 0 : index
    %65 = vector.load %arg9[%64, %c0_50, %c0_51] : memref<8x8x128xf32, #tpu.memory_space<vmem>>, vector<1x8x128xf32>
    %66 = vector.shape_cast %65 : vector<1x8x128xf32> to vector<8x128xf32>
    %c0_52 = arith.constant 0 : index
    %c0_53 = arith.constant 0 : index
    %67 = vector.load %arg11[%c0_52, %c0_53] : memref<8x128xf32, #tpu.memory_space<vmem>>, vector<8x128xf32>
    %68 = arith.truncf %67 : vector<8x128xf32> to vector<8x128xbf16>
    %cst_54 = arith.constant dense<0.000000e+00> : vector<8x128xf32>
    %69 = tpu.matmul %68, %11, %cst_54 {dimension_numbers = #tpu.dot_dimension_numbers<[1], [0], [0], [1], [0, 0, 1, 1], [], []>} : vector<8x128xbf16>, vector<128x128xbf16>, vector<8x128xf32> -> vector<8x128xf32>
    %70 = arith.addf %66, %69 : vector<8x128xf32>
    %71 = math.tanh %70 : vector<8x128xf32>
    %c0_55 = arith.constant 0 : index
    %c0_56 = arith.constant 0 : index
    %72 = vector.load %arg11[%c0_55, %c0_56] : memref<8x128xf32, #tpu.memory_space<vmem>>, vector<8x128xf32>
    tpu.vector_store %arg11[%c0_55, %c0_56], %71 {strides = array<i32>} : memref<8x128xf32, #tpu.memory_space<vmem>>, vector<8x128xf32>,
    %73 = arith.index_cast %c4_i32 : i32 to index
    %c0_57 = arith.constant 0 : index
    %c0_58 = arith.constant 0 : index
    %74 = vector.load %arg10[%73, %c0_57, %c0_58] : memref<8x8x128xf32, #tpu.memory_space<vmem>>, vector<1x8x128xf32>
    %75 = vector.shape_cast %74 : vector<1x8x128xf32> to vector<8x128xf32>
    %76 = vector.shape_cast %71 : vector<8x128xf32> to vector<1x8x128xf32>
    tpu.vector_store %arg10[%73, %c0_57, %c0_58], %76 {strides = array<i32>} : memref<8x8x128xf32, #tpu.memory_space<vmem>>, vector<1x8x128xf32>,
    %c5_i32 = arith.constant 5 : i32
    %77 = arith.index_cast %c5_i32 : i32 to index
    %c0_59 = arith.constant 0 : index
    %c0_60 = arith.constant 0 : index
    %78 = vector.load %arg9[%77, %c0_59, %c0_60] : memref<8x8x128xf32, #tpu.memory_space<vmem>>, vector<1x8x128xf32>
    %79 = vector.shape_cast %78 : vector<1x8x128xf32> to vector<8x128xf32>
    %c0_61 = arith.constant 0 : index
    %c0_62 = arith.constant 0 : index
    %80 = vector.load %arg11[%c0_61, %c0_62] : memref<8x128xf32, #tpu.memory_space<vmem>>, vector<8x128xf32>
    %81 = arith.truncf %80 : vector<8x128xf32> to vector<8x128xbf16>
    %cst_63 = arith.constant dense<0.000000e+00> : vector<8x128xf32>
    %82 = tpu.matmul %81, %11, %cst_63 {dimension_numbers = #tpu.dot_dimension_numbers<[1], [0], [0], [1], [0, 0, 1, 1], [], []>} : vector<8x128xbf16>, vector<128x128xbf16>, vector<8x128xf32> -> vector<8x128xf32>
    %83 = arith.addf %79, %82 : vector<8x128xf32>
    %84 = math.tanh %83 : vector<8x128xf32>
    %c0_64 = arith.constant 0 : index
    %c0_65 = arith.constant 0 : index
    %85 = vector.load %arg11[%c0_64, %c0_65] : memref<8x128xf32, #tpu.memory_space<vmem>>, vector<8x128xf32>
    tpu.vector_store %arg11[%c0_64, %c0_65], %84 {strides = array<i32>} : memref<8x128xf32, #tpu.memory_space<vmem>>, vector<8x128xf32>,
    %86 = arith.index_cast %c5_i32 : i32 to index
    %c0_66 = arith.constant 0 : index
    %c0_67 = arith.constant 0 : index
    %87 = vector.load %arg10[%86, %c0_66, %c0_67] : memref<8x8x128xf32, #tpu.memory_space<vmem>>, vector<1x8x128xf32>
    %88 = vector.shape_cast %87 : vector<1x8x128xf32> to vector<8x128xf32>
    %89 = vector.shape_cast %84 : vector<8x128xf32> to vector<1x8x128xf32>
    tpu.vector_store %arg10[%86, %c0_66, %c0_67], %89 {strides = array<i32>} : memref<8x8x128xf32, #tpu.memory_space<vmem>>, vector<1x8x128xf32>,
    %c6_i32 = arith.constant 6 : i32
    %90 = arith.index_cast %c6_i32 : i32 to index
    %c0_68 = arith.constant 0 : index
    %c0_69 = arith.constant 0 : index
    %91 = vector.load %arg9[%90, %c0_68, %c0_69] : memref<8x8x128xf32, #tpu.memory_space<vmem>>, vector<1x8x128xf32>
    %92 = vector.shape_cast %91 : vector<1x8x128xf32> to vector<8x128xf32>
    %c0_70 = arith.constant 0 : index
    %c0_71 = arith.constant 0 : index
    %93 = vector.load %arg11[%c0_70, %c0_71] : memref<8x128xf32, #tpu.memory_space<vmem>>, vector<8x128xf32>
    %94 = arith.truncf %93 : vector<8x128xf32> to vector<8x128xbf16>
    %cst_72 = arith.constant dense<0.000000e+00> : vector<8x128xf32>
    %95 = tpu.matmul %94, %11, %cst_72 {dimension_numbers = #tpu.dot_dimension_numbers<[1], [0], [0], [1], [0, 0, 1, 1], [], []>} : vector<8x128xbf16>, vector<128x128xbf16>, vector<8x128xf32> -> vector<8x128xf32>
    %96 = arith.addf %92, %95 : vector<8x128xf32>
    %97 = math.tanh %96 : vector<8x128xf32>
    %c0_73 = arith.constant 0 : index
    %c0_74 = arith.constant 0 : index
    %98 = vector.load %arg11[%c0_73, %c0_74] : memref<8x128xf32, #tpu.memory_space<vmem>>, vector<8x128xf32>
    tpu.vector_store %arg11[%c0_73, %c0_74], %97 {strides = array<i32>} : memref<8x128xf32, #tpu.memory_space<vmem>>, vector<8x128xf32>,
    %99 = arith.index_cast %c6_i32 : i32 to index
    %c0_75 = arith.constant 0 : index
    %c0_76 = arith.constant 0 : index
    %100 = vector.load %arg10[%99, %c0_75, %c0_76] : memref<8x8x128xf32, #tpu.memory_space<vmem>>, vector<1x8x128xf32>
    %101 = vector.shape_cast %100 : vector<1x8x128xf32> to vector<8x128xf32>
    %102 = vector.shape_cast %97 : vector<8x128xf32> to vector<1x8x128xf32>
    tpu.vector_store %arg10[%99, %c0_75, %c0_76], %102 {strides = array<i32>} : memref<8x8x128xf32, #tpu.memory_space<vmem>>, vector<1x8x128xf32>,
    %c7_i32 = arith.constant 7 : i32
    %103 = arith.index_cast %c7_i32 : i32 to index
    %c0_77 = arith.constant 0 : index
    %c0_78 = arith.constant 0 : index
    %104 = vector.load %arg9[%103, %c0_77, %c0_78] : memref<8x8x128xf32, #tpu.memory_space<vmem>>, vector<1x8x128xf32>
    %105 = vector.shape_cast %104 : vector<1x8x128xf32> to vector<8x128xf32>
    %c0_79 = arith.constant 0 : index
    %c0_80 = arith.constant 0 : index
    %106 = vector.load %arg11[%c0_79, %c0_80] : memref<8x128xf32, #tpu.memory_space<vmem>>, vector<8x128xf32>
    %107 = arith.truncf %106 : vector<8x128xf32> to vector<8x128xbf16>
    %cst_81 = arith.constant dense<0.000000e+00> : vector<8x128xf32>
    %108 = tpu.matmul %107, %11, %cst_81 {dimension_numbers = #tpu.dot_dimension_numbers<[1], [0], [0], [1], [0, 0, 1, 1], [], []>} : vector<8x128xbf16>, vector<128x128xbf16>, vector<8x128xf32> -> vector<8x128xf32>
    %109 = arith.addf %105, %108 : vector<8x128xf32>
    %110 = math.tanh %109 : vector<8x128xf32>
    %c0_82 = arith.constant 0 : index
    %c0_83 = arith.constant 0 : index
    %111 = vector.load %arg11[%c0_82, %c0_83] : memref<8x128xf32, #tpu.memory_space<vmem>>, vector<8x128xf32>
    tpu.vector_store %arg11[%c0_82, %c0_83], %110 {strides = array<i32>} : memref<8x128xf32, #tpu.memory_space<vmem>>, vector<8x128xf32>,
    %112 = arith.index_cast %c7_i32 : i32 to index
    %c0_84 = arith.constant 0 : index
    %c0_85 = arith.constant 0 : index
    %113 = vector.load %arg10[%112, %c0_84, %c0_85] : memref<8x8x128xf32, #tpu.memory_space<vmem>>, vector<1x8x128xf32>
    %114 = vector.shape_cast %113 : vector<1x8x128xf32> to vector<8x128xf32>
    %115 = vector.shape_cast %110 : vector<8x128xf32> to vector<1x8x128xf32>
    tpu.vector_store %arg10[%112, %c0_84, %c0_85], %115 {strides = array<i32>} : memref<8x8x128xf32, #tpu.memory_space<vmem>>, vector<1x8x128xf32>,
    %c8_i32 = arith.constant 8 : i32
    %c0_86 = arith.constant 0 : index
    %c0_87 = arith.constant 0 : index
    %c0_88 = arith.constant 0 : index
    %116 = vector.load %arg10[%c0_86, %c0_87, %c0_88] : memref<8x8x128xf32, #tpu.memory_space<vmem>>, vector<8x8x128xf32>
    %117 = arith.truncf %116 : vector<8x8x128xf32> to vector<8x8x128xbf16>
    %118 = vector.shape_cast %117 : vector<8x8x128xbf16> to vector<64x128xbf16>
    %c0_89 = arith.constant 0 : index
    %c0_90 = arith.constant 0 : index
    %119 = vector.load %arg5[%c0_89, %c0_90] : memref<128x128xbf16, #tpu.memory_space<vmem>>, vector<128x128xbf16>
    %cst_91 = arith.constant dense<0.000000e+00> : vector<64x128xf32>
    %120 = tpu.matmul %118, %119, %cst_91 {dimension_numbers = #tpu.dot_dimension_numbers<[1], [0], [0], [1], [0, 0, 1, 1], [], []>} : vector<64x128xbf16>, vector<128x128xbf16>, vector<64x128xf32> -> vector<64x128xf32>
    %c0_92 = arith.constant 0 : index
    %c0_93 = arith.constant 0 : index
    %121 = vector.load %arg7[%c0_92, %c0_93] : memref<1x128xf32, #tpu.memory_space<vmem>>, vector<1x128xf32>
    %122 = vector.broadcast %121 : vector<1x128xf32> to vector<64x128xf32>
    %123 = arith.addf %120, %122 : vector<64x128xf32>
    %124 = vector.shape_cast %123 : vector<64x128xf32> to vector<8x8x128xf32>
    %c0_94 = arith.constant 0 : index
    %c0_95 = arith.constant 0 : index
    %c0_96 = arith.constant 0 : index
    %125 = vector.load %arg9[%c0_94, %c0_95, %c0_96] : memref<8x8x128xf32, #tpu.memory_space<vmem>>, vector<8x8x128xf32>
    tpu.vector_store %arg9[%c0_94, %c0_95, %c0_96], %124 {strides = array<i32>} : memref<8x8x128xf32, #tpu.memory_space<vmem>>, vector<8x8x128xf32>,
    %cst_97 = arith.constant 0.000000e+00 : f32
    %126 = vector.broadcast %cst_97 : f32 to vector<8x128xf32>
    %c0_98 = arith.constant 0 : index
    %c0_99 = arith.constant 0 : index
    %127 = vector.load %arg11[%c0_98, %c0_99] : memref<8x128xf32, #tpu.memory_space<vmem>>, vector<8x128xf32>
    tpu.vector_store %arg11[%c0_98, %c0_99], %126 {strides = array<i32>} : memref<8x128xf32, #tpu.memory_space<vmem>>, vector<8x128xf32>,
    %c0_100 = arith.constant 0 : index
    %c0_101 = arith.constant 0 : index
    %128 = vector.load %arg6[%c0_100, %c0_101] : memref<128x128xbf16, #tpu.memory_space<vmem>>, vector<128x128xbf16>
    %c0_i32_102 = arith.constant 0 : i32
    %129 = arith.index_cast %c0_i32_102 : i32 to index
    %c0_103 = arith.constant 0 : index
    %c0_104 = arith.constant 0 : index
    %130 = vector.load %arg9[%129, %c0_103, %c0_104] : memref<8x8x128xf32, #tpu.memory_space<vmem>>, vector<1x8x128xf32>
    %131 = vector.shape_cast %130 : vector<1x8x128xf32> to vector<8x128xf32>
    %c0_105 = arith.constant 0 : index
    %c0_106 = arith.constant 0 : index
    %132 = vector.load %arg11[%c0_105, %c0_106] : memref<8x128xf32, #tpu.memory_space<vmem>>, vector<8x128xf32>
    %133 = arith.truncf %132 : vector<8x128xf32> to vector<8x128xbf16>
    %cst_107 = arith.constant dense<0.000000e+00> : vector<8x128xf32>
    %134 = tpu.matmul %133, %128, %cst_107 {dimension_numbers = #tpu.dot_dimension_numbers<[1], [0], [0], [1], [0, 0, 1, 1], [], []>} : vector<8x128xbf16>, vector<128x128xbf16>, vector<8x128xf32> -> vector<8x128xf32>
    %135 = arith.addf %131, %134 : vector<8x128xf32>
    %136 = math.tanh %135 : vector<8x128xf32>
    %c0_108 = arith.constant 0 : index
    %c0_109 = arith.constant 0 : index
    %137 = vector.load %arg11[%c0_108, %c0_109] : memref<8x128xf32, #tpu.memory_space<vmem>>, vector<8x128xf32>
    tpu.vector_store %arg11[%c0_108, %c0_109], %136 {strides = array<i32>} : memref<8x128xf32, #tpu.memory_space<vmem>>, vector<8x128xf32>,
    %c1_i32_110 = arith.constant 1 : i32
    %138 = arith.index_cast %c1_i32_110 : i32 to index
    %c0_111 = arith.constant 0 : index
    %c0_112 = arith.constant 0 : index
    %139 = vector.load %arg9[%138, %c0_111, %c0_112] : memref<8x8x128xf32, #tpu.memory_space<vmem>>, vector<1x8x128xf32>
    %140 = vector.shape_cast %139 : vector<1x8x128xf32> to vector<8x128xf32>
    %c0_113 = arith.constant 0 : index
    %c0_114 = arith.constant 0 : index
    %141 = vector.load %arg11[%c0_113, %c0_114] : memref<8x128xf32, #tpu.memory_space<vmem>>, vector<8x128xf32>
    %142 = arith.truncf %141 : vector<8x128xf32> to vector<8x128xbf16>
    %cst_115 = arith.constant dense<0.000000e+00> : vector<8x128xf32>
    %143 = tpu.matmul %142, %128, %cst_115 {dimension_numbers = #tpu.dot_dimension_numbers<[1], [0], [0], [1], [0, 0, 1, 1], [], []>} : vector<8x128xbf16>, vector<128x128xbf16>, vector<8x128xf32> -> vector<8x128xf32>
    %144 = arith.addf %140, %143 : vector<8x128xf32>
    %145 = math.tanh %144 : vector<8x128xf32>
    %c0_116 = arith.constant 0 : index
    %c0_117 = arith.constant 0 : index
    %146 = vector.load %arg11[%c0_116, %c0_117] : memref<8x128xf32, #tpu.memory_space<vmem>>, vector<8x128xf32>
    tpu.vector_store %arg11[%c0_116, %c0_117], %145 {strides = array<i32>} : memref<8x128xf32, #tpu.memory_space<vmem>>, vector<8x128xf32>,
    %c2_i32_118 = arith.constant 2 : i32
    %147 = arith.index_cast %c2_i32_118 : i32 to index
    %c0_119 = arith.constant 0 : index
    %c0_120 = arith.constant 0 : index
    %148 = vector.load %arg9[%147, %c0_119, %c0_120] : memref<8x8x128xf32, #tpu.memory_space<vmem>>, vector<1x8x128xf32>
    %149 = vector.shape_cast %148 : vector<1x8x128xf32> to vector<8x128xf32>
    %c0_121 = arith.constant 0 : index
    %c0_122 = arith.constant 0 : index
    %150 = vector.load %arg11[%c0_121, %c0_122] : memref<8x128xf32, #tpu.memory_space<vmem>>, vector<8x128xf32>
    %151 = arith.truncf %150 : vector<8x128xf32> to vector<8x128xbf16>
    %cst_123 = arith.constant dense<0.000000e+00> : vector<8x128xf32>
    %152 = tpu.matmul %151, %128, %cst_123 {dimension_numbers = #tpu.dot_dimension_numbers<[1], [0], [0], [1], [0, 0, 1, 1], [], []>} : vector<8x128xbf16>, vector<128x128xbf16>, vector<8x128xf32> -> vector<8x128xf32>
    %153 = arith.addf %149, %152 : vector<8x128xf32>
    %154 = math.tanh %153 : vector<8x128xf32>
    %c0_124 = arith.constant 0 : index
    %c0_125 = arith.constant 0 : index
    %155 = vector.load %arg11[%c0_124, %c0_125] : memref<8x128xf32, #tpu.memory_space<vmem>>, vector<8x128xf32>
    tpu.vector_store %arg11[%c0_124, %c0_125], %154 {strides = array<i32>} : memref<8x128xf32, #tpu.memory_space<vmem>>, vector<8x128xf32>,
    %c3_i32_126 = arith.constant 3 : i32
    %156 = arith.index_cast %c3_i32_126 : i32 to index
    %c0_127 = arith.constant 0 : index
    %c0_128 = arith.constant 0 : index
    %157 = vector.load %arg9[%156, %c0_127, %c0_128] : memref<8x8x128xf32, #tpu.memory_space<vmem>>, vector<1x8x128xf32>
    %158 = vector.shape_cast %157 : vector<1x8x128xf32> to vector<8x128xf32>
    %c0_129 = arith.constant 0 : index
    %c0_130 = arith.constant 0 : index
    %159 = vector.load %arg11[%c0_129, %c0_130] : memref<8x128xf32, #tpu.memory_space<vmem>>, vector<8x128xf32>
    %160 = arith.truncf %159 : vector<8x128xf32> to vector<8x128xbf16>
    %cst_131 = arith.constant dense<0.000000e+00> : vector<8x128xf32>
    %161 = tpu.matmul %160, %128, %cst_131 {dimension_numbers = #tpu.dot_dimension_numbers<[1], [0], [0], [1], [0, 0, 1, 1], [], []>} : vector<8x128xbf16>, vector<128x128xbf16>, vector<8x128xf32> -> vector<8x128xf32>
    %162 = arith.addf %158, %161 : vector<8x128xf32>
    %163 = math.tanh %162 : vector<8x128xf32>
    %c0_132 = arith.constant 0 : index
    %c0_133 = arith.constant 0 : index
    %164 = vector.load %arg11[%c0_132, %c0_133] : memref<8x128xf32, #tpu.memory_space<vmem>>, vector<8x128xf32>
    tpu.vector_store %arg11[%c0_132, %c0_133], %163 {strides = array<i32>} : memref<8x128xf32, #tpu.memory_space<vmem>>, vector<8x128xf32>,
    %c4_i32_134 = arith.constant 4 : i32
    %165 = arith.index_cast %c4_i32_134 : i32 to index
    %c0_135 = arith.constant 0 : index
    %c0_136 = arith.constant 0 : index
    %166 = vector.load %arg9[%165, %c0_135, %c0_136] : memref<8x8x128xf32, #tpu.memory_space<vmem>>, vector<1x8x128xf32>
    %167 = vector.shape_cast %166 : vector<1x8x128xf32> to vector<8x128xf32>
    %c0_137 = arith.constant 0 : index
    %c0_138 = arith.constant 0 : index
    %168 = vector.load %arg11[%c0_137, %c0_138] : memref<8x128xf32, #tpu.memory_space<vmem>>, vector<8x128xf32>
    %169 = arith.truncf %168 : vector<8x128xf32> to vector<8x128xbf16>
    %cst_139 = arith.constant dense<0.000000e+00> : vector<8x128xf32>
    %170 = tpu.matmul %169, %128, %cst_139 {dimension_numbers = #tpu.dot_dimension_numbers<[1], [0], [0], [1], [0, 0, 1, 1], [], []>} : vector<8x128xbf16>, vector<128x128xbf16>, vector<8x128xf32> -> vector<8x128xf32>
    %171 = arith.addf %167, %170 : vector<8x128xf32>
    %172 = math.tanh %171 : vector<8x128xf32>
    %c0_140 = arith.constant 0 : index
    %c0_141 = arith.constant 0 : index
    %173 = vector.load %arg11[%c0_140, %c0_141] : memref<8x128xf32, #tpu.memory_space<vmem>>, vector<8x128xf32>
    tpu.vector_store %arg11[%c0_140, %c0_141], %172 {strides = array<i32>} : memref<8x128xf32, #tpu.memory_space<vmem>>, vector<8x128xf32>,
    %c5_i32_142 = arith.constant 5 : i32
    %174 = arith.index_cast %c5_i32_142 : i32 to index
    %c0_143 = arith.constant 0 : index
    %c0_144 = arith.constant 0 : index
    %175 = vector.load %arg9[%174, %c0_143, %c0_144] : memref<8x8x128xf32, #tpu.memory_space<vmem>>, vector<1x8x128xf32>
    %176 = vector.shape_cast %175 : vector<1x8x128xf32> to vector<8x128xf32>
    %c0_145 = arith.constant 0 : index
    %c0_146 = arith.constant 0 : index
    %177 = vector.load %arg11[%c0_145, %c0_146] : memref<8x128xf32, #tpu.memory_space<vmem>>, vector<8x128xf32>
    %178 = arith.truncf %177 : vector<8x128xf32> to vector<8x128xbf16>
    %cst_147 = arith.constant dense<0.000000e+00> : vector<8x128xf32>
    %179 = tpu.matmul %178, %128, %cst_147 {dimension_numbers = #tpu.dot_dimension_numbers<[1], [0], [0], [1], [0, 0, 1, 1], [], []>} : vector<8x128xbf16>, vector<128x128xbf16>, vector<8x128xf32> -> vector<8x128xf32>
    %180 = arith.addf %176, %179 : vector<8x128xf32>
    %181 = math.tanh %180 : vector<8x128xf32>
    %c0_148 = arith.constant 0 : index
    %c0_149 = arith.constant 0 : index
    %182 = vector.load %arg11[%c0_148, %c0_149] : memref<8x128xf32, #tpu.memory_space<vmem>>, vector<8x128xf32>
    tpu.vector_store %arg11[%c0_148, %c0_149], %181 {strides = array<i32>} : memref<8x128xf32, #tpu.memory_space<vmem>>, vector<8x128xf32>,
    %c6_i32_150 = arith.constant 6 : i32
    %183 = arith.index_cast %c6_i32_150 : i32 to index
    %c0_151 = arith.constant 0 : index
    %c0_152 = arith.constant 0 : index
    %184 = vector.load %arg9[%183, %c0_151, %c0_152] : memref<8x8x128xf32, #tpu.memory_space<vmem>>, vector<1x8x128xf32>
    %185 = vector.shape_cast %184 : vector<1x8x128xf32> to vector<8x128xf32>
    %c0_153 = arith.constant 0 : index
    %c0_154 = arith.constant 0 : index
    %186 = vector.load %arg11[%c0_153, %c0_154] : memref<8x128xf32, #tpu.memory_space<vmem>>, vector<8x128xf32>
    %187 = arith.truncf %186 : vector<8x128xf32> to vector<8x128xbf16>
    %cst_155 = arith.constant dense<0.000000e+00> : vector<8x128xf32>
    %188 = tpu.matmul %187, %128, %cst_155 {dimension_numbers = #tpu.dot_dimension_numbers<[1], [0], [0], [1], [0, 0, 1, 1], [], []>} : vector<8x128xbf16>, vector<128x128xbf16>, vector<8x128xf32> -> vector<8x128xf32>
    %189 = arith.addf %185, %188 : vector<8x128xf32>
    %190 = math.tanh %189 : vector<8x128xf32>
    %c0_156 = arith.constant 0 : index
    %c0_157 = arith.constant 0 : index
    %191 = vector.load %arg11[%c0_156, %c0_157] : memref<8x128xf32, #tpu.memory_space<vmem>>, vector<8x128xf32>
    tpu.vector_store %arg11[%c0_156, %c0_157], %190 {strides = array<i32>} : memref<8x128xf32, #tpu.memory_space<vmem>>, vector<8x128xf32>,
    %c7_i32_158 = arith.constant 7 : i32
    %192 = arith.index_cast %c7_i32_158 : i32 to index
    %c0_159 = arith.constant 0 : index
    %c0_160 = arith.constant 0 : index
    %193 = vector.load %arg9[%192, %c0_159, %c0_160] : memref<8x8x128xf32, #tpu.memory_space<vmem>>, vector<1x8x128xf32>
    %194 = vector.shape_cast %193 : vector<1x8x128xf32> to vector<8x128xf32>
    %c0_161 = arith.constant 0 : index
    %c0_162 = arith.constant 0 : index
    %195 = vector.load %arg11[%c0_161, %c0_162] : memref<8x128xf32, #tpu.memory_space<vmem>>, vector<8x128xf32>
    %196 = arith.truncf %195 : vector<8x128xf32> to vector<8x128xbf16>
    %cst_163 = arith.constant dense<0.000000e+00> : vector<8x128xf32>
    %197 = tpu.matmul %196, %128, %cst_163 {dimension_numbers = #tpu.dot_dimension_numbers<[1], [0], [0], [1], [0, 0, 1, 1], [], []>} : vector<8x128xbf16>, vector<128x128xbf16>, vector<8x128xf32> -> vector<8x128xf32>
    %198 = arith.addf %194, %197 : vector<8x128xf32>
    %199 = math.tanh %198 : vector<8x128xf32>
    %c0_164 = arith.constant 0 : index
    %c0_165 = arith.constant 0 : index
    %200 = vector.load %arg11[%c0_164, %c0_165] : memref<8x128xf32, #tpu.memory_space<vmem>>, vector<8x128xf32>
    tpu.vector_store %arg11[%c0_164, %c0_165], %199 {strides = array<i32>} : memref<8x128xf32, #tpu.memory_space<vmem>>, vector<8x128xf32>,
    %c8_i32_166 = arith.constant 8 : i32
    %c0_167 = arith.constant 0 : index
    %c0_168 = arith.constant 0 : index
    %201 = vector.load %arg11[%c0_167, %c0_168] : memref<8x128xf32, #tpu.memory_space<vmem>>, vector<8x128xf32>
    %c0_169 = arith.constant 0 : index
    %c0_170 = arith.constant 0 : index
    %202 = vector.load %arg8[%c0_169, %c0_170] : memref<8x128xf32, #tpu.memory_space<vmem>>, vector<8x128xf32>
    tpu.vector_store %arg8[%c0_169, %c0_170], %201 {strides = array<i32>} : memref<8x128xf32, #tpu.memory_space<vmem>>, vector<8x128xf32>,
    return
  }
  func.func @transform_0(%arg0: i32) -> (i32, i32, i32) {
    %c0_i32 = arith.constant 0 : i32
    %c0_i32_0 = arith.constant 0 : i32
    %c0_i32_1 = arith.constant 0 : i32
    return %c0_i32, %arg0, %c0_i32_0 : i32, i32, i32
  }
  func.func @transform_1(%arg0: i32) -> (i32, i32) {
    %c0_i32 = arith.constant 0 : i32
    %c0_i32_0 = arith.constant 0 : i32
    %c0_i32_1 = arith.constant 0 : i32
    return %c0_i32, %c0_i32_0 : i32, i32
  }
  func.func @transform_2(%arg0: i32) -> (i32, i32) {
    %c0_i32 = arith.constant 0 : i32
    %c0_i32_0 = arith.constant 0 : i32
    %c0_i32_1 = arith.constant 0 : i32
    return %c0_i32, %c0_i32_0 : i32, i32
  }
  func.func @transform_3(%arg0: i32) -> (i32, i32) {
    %c0_i32 = arith.constant 0 : i32
    %c0_i32_0 = arith.constant 0 : i32
    %c0_i32_1 = arith.constant 0 : i32
    return %c0_i32, %c0_i32_0 : i32, i32
  }
  func.func @transform_4(%arg0: i32) -> (i32, i32) {
    %c0_i32 = arith.constant 0 : i32
    %c0_i32_0 = arith.constant 0 : i32
    %c0_i32_1 = arith.constant 0 : i32
    return %c0_i32, %c0_i32_0 : i32, i32
  }
  func.func @transform_5(%arg0: i32) -> (i32, i32) {
    %c0_i32 = arith.constant 0 : i32
    %c0_i32_0 = arith.constant 0 : i32
    %c0_i32_1 = arith.constant 0 : i32
    return %c0_i32, %c0_i32_0 : i32, i32
  }
  func.func @transform_6(%arg0: i32) -> (i32, i32) {
    %c0_i32 = arith.constant 0 : i32
    %c0_i32_0 = arith.constant 0 : i32
    %c0_i32_1 = arith.constant 0 : i32
    return %c0_i32, %c0_i32_0 : i32, i32
  }
  func.func @transform_7(%arg0: i32) -> (i32, i32) {
    %c0_i32 = arith.constant 0 : i32
    %c0_i32_0 = arith.constant 0 : i32
    return %arg0, %c0_i32 : i32, i32
  }
}

</mosaic_0001>

<llo_original>
// kernel: rnn_model_forward.3
$region0: #{rnn_model_forward.3}
  #allocation0 [shape = 'u32[]', space=smem, size = 0x4, offset = 0x4, fixed_abs, tag = 'smem constant byte address 0x4 - core index']
  #allocation1 [shape = 'u32[144,128]{1,0:T(1,128)}', space=vmem, size = 0x12000, scoped, tag = 'internal scratch']
  %s0 = inlined_call_operand.vmem [shape: f32[8,128], index: 0, kind: input, shape index: {}]
  %s1 = inlined_call_operand.vmem [shape: bf16[128,128], index: 1, kind: input, shape index: {}]
  %s2 = inlined_call_operand.vmem [shape: f32[1,128], index: 2, kind: input, shape index: {}]
  %s3 = inlined_call_operand.vmem [shape: f32[8,128], index: 3, kind: output, shape index: {}]
  %s4 = sld [smem:[#allocation0]]
  $region22: #{rnn_model_forward.3} parent=0
    _
  %s6 = ssub.s32 1, %s4
  %s7 = scalar_select 0, %s6, %s4
  // Predicated region
  $region2: #{rnn_model_forward.3} parent=0 // pred_check
    _
  $region3: #{rnn_model_forward.3} parent=0 // pred_check_branch
    %9 = sbr.rel (0) target = $region5
  $region4: #{rnn_model_forward.3} parent=0 // pred_region
    _
  $region5: #{rnn_model_forward.3} parent=0 // pred_fallthru
    _
  // Predicated region
  $region6: #{rnn_model_forward.3} parent=0 // pred_check
    _
  $region7: #{rnn_model_forward.3} parent=0 // pred_check_branch
    %11 = sbr.rel (0) target = $region9
  $region8: #{rnn_model_forward.3} parent=0 // pred_region
    _
  $region9: #{rnn_model_forward.3} parent=0 // pred_fallthru
    _
  // Predicated region
  $region10: #{rnn_model_forward.3} parent=0 // pred_check
    _
  $region11: #{rnn_model_forward.3} parent=0 // pred_check_branch
    %13 = sbr.rel (0) target = $region13
  $region12: #{rnn_model_forward.3} parent=0 // pred_region
    _
  $region13: #{rnn_model_forward.3} parent=0 // pred_fallthru
    _
  %v15 = vld [vmem:[%s0] sm:$0xff]
  %v16 = vpack.c.bf16 %v15, %v15
  %v17 = vld [vmem:[%s1] sm:$0xf]
  %v18 = vld [vmem:[%s1 + $0x4] sm:$0xf]
  %v19 = vld [vmem:[%s1 + $0x8] sm:$0xf]
  %v20 = vld [vmem:[%s1 + $0xc] sm:$0xf]
  %v21 = vld [vmem:[%s1 + $0x10] sm:$0xf]
  %v22 = vld [vmem:[%s1 + $0x14] sm:$0xf]
  %v23 = vld [vmem:[%s1 + $0x18] sm:$0xf]
  %v24 = vld [vmem:[%s1 + $0x1c] sm:$0xf]
  %v25 = vld [vmem:[%s1 + $0x20] sm:$0xf]
  %v26 = vld [vmem:[%s1 + $0x24] sm:$0xf]
  %v27 = vld [vmem:[%s1 + $0x28] sm:$0xf]
  %v28 = vld [vmem:[%s1 + $0x2c] sm:$0xf]
  %v29 = vld [vmem:[%s1 + $0x30] sm:$0xf]
  %v30 = vld [vmem:[%s1 + $0x34] sm:$0xf]
  %v31 = vld [vmem:[%s1 + $0x38] sm:$0xf]
  %v32 = vld [vmem:[%s1 + $0x3c] sm:$0xf]
  %v33 = vld [vmem:[%s2] sm:$0x1]
  %v35 = vlaneseq
  %v36 = vshrl.u32 %v35, 7
  %v37 = vsub.s32 0, %v36
  %v38 = vrot.slane %v33, %v37
  %v56 = vunpack.c.l.b16 %v17
  %v57 = vunpack.c.l.b16 %v18
  %v58 = vunpack.c.l.b16 %v19
  %v59 = vunpack.c.l.b16 %v20
  %v60 = vunpack.c.l.b16 %v21
  %v61 = vunpack.c.l.b16 %v22
  %v62 = vunpack.c.l.b16 %v23
  %v63 = vunpack.c.l.b16 %v24
  %v64 = vunpack.c.l.b16 %v25
  %v65 = vunpack.c.l.b16 %v26
  %v66 = vunpack.c.l.b16 %v27
  %v67 = vunpack.c.l.b16 %v28
  %v68 = vunpack.c.l.b16 %v29
  %v69 = vunpack.c.l.b16 %v30
  %v70 = vunpack.c.l.b16 %v31
  %v71 = vunpack.c.l.b16 %v32
  %v72 = vpack.c.b16 %v57, %v56
  %v73 = vpack.c.b16 %v59, %v58
  %v74 = vpack.c.b16 %v61, %v60
  %v75 = vpack.c.b16 %v63, %v62
  %v76 = vpack.c.b16 %v65, %v64
  %v77 = vpack.c.b16 %v67, %v66
  %v78 = vpack.c.b16 %v69, %v68
  %v79 = vpack.c.b16 %v71, %v70
  %88 = vmatprep.subr.bf16.mxu0 0
  %89 = vmatpush1.bf16.msra.mxu0 %v72
  %90 = vmatprep.subr.bf16.mxu0 0
  %91 = vmatpush1.bf16.msra.mxu0 %v73
  %92 = vmatprep.subr.bf16.mxu0 0
  %93 = vmatpush1.bf16.msra.mxu0 %v74
  %94 = vmatprep.subr.bf16.mxu0 0
  %95 = vmatpush1.bf16.msra.mxu0 %v75
  %96 = vmatprep.subr.bf16.mxu0 0
  %97 = vmatpush1.bf16.msra.mxu0 %v76
  %98 = vmatprep.subr.bf16.mxu0 0
  %99 = vmatpush1.bf16.msra.mxu0 %v77
  %100 = vmatprep.subr.bf16.mxu0 0
  %101 = vmatpush1.bf16.msra.mxu0 %v78
  %102 = vmatprep.subr.bf16.mxu0 0
  %103 = vmatpush1.bf16.msra.mxu0 %v79
  %104 = vmatprep.subr.bf16.mxu0 0
  %105 = vmatpush1.bf16.msra.mxu0 0
  %106 = vmatprep.subr.bf16.mxu0 0
  %107 = vmatpush1.bf16.msra.mxu0 0
  %108 = vmatprep.subr.bf16.mxu0 0
  %109 = vmatpush1.bf16.msra.mxu0 0
  %110 = vmatprep.subr.bf16.mxu0 0
  %111 = vmatpush1.bf16.msra.mxu0 0
  %112 = vmatprep.subr.bf16.mxu0 0
  %113 = vmatpush1.bf16.msra.mxu0 0
  %114 = vmatprep.subr.bf16.mxu0 0
  %115 = vmatpush1.bf16.msra.mxu0 0
  %116 = vmatprep.subr.bf16.mxu0 0
  %117 = vmatpush1.bf16.msra.mxu0 0
  %118 = vmatprep.subr.bf16.mxu0 0
  %119 = vmatpush1.bf16.msra.mxu0 0
  %120 = vmatprep.mubr.bf16.mxu0 0
  %121 = vmatmul.mubr.bf16.gmra.mrb[0].mxu0 %v16
  %v122 = vpop.f32.mrb[0].mxu0
  %v123 = vadd.f32 %v38, %v122
  %v124 = vpop.f32.mrb[0].mxu0
  %v125 = vpop.f32.mrb[0].mxu0
  %v126 = vpop.f32.mrb[0].mxu0
  %127 = vdwg.mxu0
  %128 = vst [vmem:[%s3] sm:$0xff] %v123
  // Predicated region
  $region14: #{rnn_model_forward.3} parent=0 // pred_check
    _
  $region15: #{rnn_model_forward.3} parent=0 // pred_check_branch
    %130 = sbr.rel (0) target = $region17
  $region16: #{rnn_model_forward.3} parent=0 // pred_region
    _
  $region17: #{rnn_model_forward.3} parent=0 // pred_fallthru
    _
  // Predicated region
  $region18: #{rnn_model_forward.3} parent=0 // pred_check
    _
  $region19: #{rnn_model_forward.3} parent=0 // pred_check_branch
    %132 = sbr.rel (0) target = $region21
  $region20: #{rnn_model_forward.3} parent=0 // pred_region
    _
  $region21: #{rnn_model_forward.3} parent=0 // pred_fallthru
    _

// kernel: rnn_model_forward.2
$region0: #{rnn_model_forward.2}
  #allocation0 [shape = 'u32[]', space=smem, size = 0x4, offset = 0x4, fixed_abs, tag = 'smem constant byte address 0x4 - core index']
  #allocation1 [shape = 'u32[144,128]{1,0:T(1,128)}', space=vmem, size = 0x12000, scoped, tag = 'internal scratch']
  #allocation2 [shape = 'f32[8,8,128]{2,1,0:T(8,128)}', space=vmem, size = 0x8000, scoped, tag = 'scratch operand']
  #allocation3 [shape = 'f32[8,8,128]{2,1,0:T(8,128)}', space=vmem, size = 0x8000, scoped, tag = 'scratch operand']
  #allocation4 [shape = 'f32[8,128]{1,0:T(8,128)}', space=vmem, size = 0x1000, scoped, tag = 'scratch operand']
  %s0 = inlined_call_operand.vmem [shape: bf16[8,8,128], index: 0, kind: input, shape index: {}]
  %s1 = inlined_call_operand.vmem [shape: bf16[128,128], index: 1, kind: input, shape index: {}]
  %s2 = inlined_call_operand.vmem [shape: bf16[128,128], index: 2, kind: input, shape index: {}]
  %s3 = inlined_call_operand.vmem [shape: f32[1,128], index: 3, kind: input, shape index: {}]
  %s4 = inlined_call_operand.vmem [shape: bf16[128,128], index: 4, kind: input, shape index: {}]
  %s5 = inlined_call_operand.vmem [shape: bf16[128,128], index: 5, kind: input, shape index: {}]
  %s6 = inlined_call_operand.vmem [shape: f32[1,128], index: 6, kind: input, shape index: {}]
  %s7 = inlined_call_operand.vmem [shape: f32[8,128], index: 7, kind: output, shape index: {}]
  %s8 = sld [smem:[#allocation0]]
  $region38: #{rnn_model_forward.2} parent=0
    _
  %s10 = ssub.s32 1, %s8
  %s11 = scalar_select 0, %s10, %s8
  // Predicated region
  $region2: #{rnn_model_forward.2} parent=0 // pred_check
    _
  $region3: #{rnn_model_forward.2} parent=0 // pred_check_branch
    %13 = sbr.rel (0) target = $region5
  $region4: #{rnn_model_forward.2} parent=0 // pred_region
    _
  $region5: #{rnn_model_forward.2} parent=0 // pred_fallthru
    _
  // Predicated region
  $region6: #{rnn_model_forward.2} parent=0 // pred_check
    _
  $region7: #{rnn_model_forward.2} parent=0 // pred_check_branch
    %15 = sbr.rel (0) target = $region9
  $region8: #{rnn_model_forward.2} parent=0 // pred_region
    _
  $region9: #{rnn_model_forward.2} parent=0 // pred_fallthru
    _
  // Predicated region
  $region10: #{rnn_model_forward.2} parent=0 // pred_check
    _
  $region11: #{rnn_model_forward.2} parent=0 // pred_check_branch
    %17 = sbr.rel (0) target = $region13
  $region12: #{rnn_model_forward.2} parent=0 // pred_region
    _
  $region13: #{rnn_model_forward.2} parent=0 // pred_fallthru
    _
  // Predicated region
  $region14: #{rnn_model_forward.2} parent=0 // pred_check
    _
  $region15: #{rnn_model_forward.2} parent=0 // pred_check_branch
    %19 = sbr.rel (0) target = $region17
  $region16: #{rnn_model_forward.2} parent=0 // pred_region
    _
  $region17: #{rnn_model_forward.2} parent=0 // pred_fallthru
    _
  // Predicated region
  $region18: #{rnn_model_forward.2} parent=0 // pred_check
    _
  $region19: #{rnn_model_forward.2} parent=0 // pred_check_branch
    %21 = sbr.rel (0) target = $region21
  $region20: #{rnn_model_forward.2} parent=0 // pred_region
    _
  $region21: #{rnn_model_forward.2} parent=0 // pred_fallthru
    _
  // Predicated region
  $region22: #{rnn_model_forward.2} parent=0 // pred_check
    _
  $region23: #{rnn_model_forward.2} parent=0 // pred_check_branch
    %23 = sbr.rel (0) target = $region25
  $region24: #{rnn_model_forward.2} parent=0 // pred_region
    _
  $region25: #{rnn_model_forward.2} parent=0 // pred_fallthru
    _
  // Predicated region
  $region26: #{rnn_model_forward.2} parent=0 // pred_check
    _
  $region27: #{rnn_model_forward.2} parent=0 // pred_check_branch
    %25 = sbr.rel (0) target = $region29
  $region28: #{rnn_model_forward.2} parent=0 // pred_region
    _
  $region29: #{rnn_model_forward.2} parent=0 // pred_fallthru
    _
  %v27 = vld [vmem:[%s0] sm:$0xf]
  %v28 = vld [vmem:[%s0 + $0x4] sm:$0xf]
  %v29 = vld [vmem:[%s0 + $0x8] sm:$0xf]
  %v30 = vld [vmem:[%s0 + $0xc] sm:$0xf]
  %v31 = vld [vmem:[%s0 + $0x10] sm:$0xf]
  %v32 = vld [vmem:[%s0 + $0x14] sm:$0xf]
  %v33 = vld [vmem:[%s0 + $0x18] sm:$0xf]
  %v34 = vld [vmem:[%s0 + $0x1c] sm:$0xf]
  %v35 = vld [vmem:[%s1] sm:$0xf]
  %v36 = vld [vmem:[%s1 + $0x4] sm:$0xf]
  %v37 = vld [vmem:[%s1 + $0x8] sm:$0xf]
  %v38 = vld [vmem:[%s1 + $0xc] sm:$0xf]
  %v39 = vld [vmem:[%s1 + $0x10] sm:$0xf]
  %v40 = vld [vmem:[%s1 + $0x14] sm:$0xf]
  %v41 = vld [vmem:[%s1 + $0x18] sm:$0xf]
  %v42 = vld [vmem:[%s1 + $0x1c] sm:$0xf]
  %v43 = vld [vmem:[%s1 + $0x20] sm:$0xf]
  %v44 = vld [vmem:[%s1 + $0x24] sm:$0xf]
  %v45 = vld [vmem:[%s1 + $0x28] sm:$0xf]
  %v46 = vld [vmem:[%s1 + $0x2c] sm:$0xf]
  %v47 = vld [vmem:[%s1 + $0x30] sm:$0xf]
  %v48 = vld [vmem:[%s1 + $0x34] sm:$0xf]
  %v49 = vld [vmem:[%s1 + $0x38] sm:$0xf]
  %v50 = vld [vmem:[%s1 + $0x3c] sm:$0xf]
  %v51 = vld [vmem:[%s3] sm:$0x1]
  %v53 = vlaneseq
  %v54 = vshrl.u32 %v53, 7
  %v55 = vsub.s32 0, %v54
  %v56 = vrot.slane %v51, %v55
  %v66 = vunpack.c.l.b16 %v27
  %v67 = vunpack.c.l.b16 %v28
  %v68 = vunpack.c.l.b16 %v29
  %v69 = vunpack.c.l.b16 %v30
  %v70 = vunpack.c.l.b16 %v31
  %v71 = vunpack.c.l.b16 %v32
  %v72 = vunpack.c.l.b16 %v33
  %v73 = vunpack.c.l.b16 %v34
  %v74 = vpack.c.b16 %v67, %v66
  %v75 = vpack.c.b16 %v69, %v68
  %v76 = vpack.c.b16 %v71, %v70
  %v77 = vpack.c.b16 %v73, %v72
  %v98 = vunpack.c.l.b16 %v35
  %v99 = vunpack.c.l.b16 %v36
  %v100 = vunpack.c.l.b16 %v37
  %v101 = vunpack.c.l.b16 %v38
  %v102 = vunpack.c.l.b16 %v39
  %v103 = vunpack.c.l.b16 %v40
  %v104 = vunpack.c.l.b16 %v41
  %v105 = vunpack.c.l.b16 %v42
  %v106 = vunpack.c.l.b16 %v43
  %v107 = vunpack.c.l.b16 %v44
  %v108 = vunpack.c.l.b16 %v45
  %v109 = vunpack.c.l.b16 %v46
  %v110 = vunpack.c.l.b16 %v47
  %v111 = vunpack.c.l.b16 %v48
  %v112 = vunpack.c.l.b16 %v49
  %v113 = vunpack.c.l.b16 %v50
  %v114 = vpack.c.b16 %v99, %v98
  %v115 = vpack.c.b16 %v101, %v100
  %v116 = vpack.c.b16 %v103, %v102
  %v117 = vpack.c.b16 %v105, %v104
  %v118 = vpack.c.b16 %v107, %v106
  %v119 = vpack.c.b16 %v109, %v108
  %v120 = vpack.c.b16 %v111, %v110
  %v121 = vpack.c.b16 %v113, %v112
  %130 = vmatprep.subr.bf16.mxu0 0
  %131 = vmatpush1.bf16.msra.mxu0 %v114
  %132 = vmatprep.subr.bf16.mxu0 0
  %133 = vmatpush1.bf16.msra.mxu0 %v115
  %134 = vmatprep.subr.bf16.mxu0 0
  %135 = vmatpush1.bf16.msra.mxu0 %v116
  %136 = vmatprep.subr.bf16.mxu0 0
  %137 = vmatpush1.bf16.msra.mxu0 %v117
  %138 = vmatprep.subr.bf16.mxu0 0
  %139 = vmatpush1.bf16.msra.mxu0 %v118
  %140 = vmatprep.subr.bf16.mxu0 0
  %141 = vmatpush1.bf16.msra.mxu0 %v119
  %142 = vmatprep.subr.bf16.mxu0 0
  %143 = vmatpush1.bf16.msra.mxu0 %v120
  %144 = vmatprep.subr.bf16.mxu0 0
  %145 = vmatpush1.bf16.msra.mxu0 %v121
  %146 = vmatprep.subr.bf16.mxu0 0
  %147 = vmatpush1.bf16.msra.mxu0 0
  %148 = vmatprep.subr.bf16.mxu0 0
  %149 = vmatpush1.bf16.msra.mxu0 0
  %150 = vmatprep.subr.bf16.mxu0 0
  %151 = vmatpush1.bf16.msra.mxu0 0
  %152 = vmatprep.subr.bf16.mxu0 0
  %153 = vmatpush1.bf16.msra.mxu0 0
  %154 = vmatprep.subr.bf16.mxu0 0
  %155 = vmatpush1.bf16.msra.mxu0 0
  %156 = vmatprep.subr.bf16.mxu0 0
  %157 = vmatpush1.bf16.msra.mxu0 0
  %158 = vmatprep.subr.bf16.mxu0 0
  %159 = vmatpush1.bf16.msra.mxu0 0
  %160 = vmatprep.subr.bf16.mxu0 0
  %161 = vmatpush1.bf16.msra.mxu0 0
  %162 = vmatprep.mubr.bf16.mxu0 0
  %163 = vmatmul.mubr.bf16.gmra.mrb[0].mxu0 %v74
  %v164 = vpop.f32.mrb[0].mxu0
  %v165 = vadd.f32 %v56, %v164
  %v166 = vpop.f32.mrb[0].mxu0
  %v167 = vpop.f32.mrb[0].mxu0
  %v168 = vadd.f32 %v56, %v167
  %v169 = vpop.f32.mrb[0].mxu0
  %170 = vmatprep.mubr.bf16.mxu0 0
  %171 = vmatmul.mubr.bf16.gmra.mrb[0].mxu0 %v75
  %v172 = vpop.f32.mrb[0].mxu0
  %v173 = vadd.f32 %v56, %v172
  %v174 = vpop.f32.mrb[0].mxu0
  %v175 = vpop.f32.mrb[0].mxu0
  %v176 = vadd.f32 %v56, %v175
  %v177 = vpop.f32.mrb[0].mxu0
  %178 = vmatprep.mubr.bf16.mxu0 0
  %179 = vmatmul.mubr.bf16.gmra.mrb[0].mxu0 %v76
  %v180 = vpop.f32.mrb[0].mxu0
  %v181 = vadd.f32 %v56, %v180
  %v182 = vpop.f32.mrb[0].mxu0
  %v183 = vpop.f32.mrb[0].mxu0
  %v184 = vadd.f32 %v56, %v183
  %v185 = vpop.f32.mrb[0].mxu0
  %186 = vmatprep.mubr.bf16.mxu0 0
  %187 = vmatmul.mubr.bf16.gmra.mrb[0].mxu0 %v77
  %v188 = vpop.f32.mrb[0].mxu0
  %v189 = vadd.f32 %v56, %v188
  %v190 = vpop.f32.mrb[0].mxu0
  %v191 = vpop.f32.mrb[0].mxu0
  %v192 = vadd.f32 %v56, %v191
  %v193 = vpop.f32.mrb[0].mxu0
  %194 = vdwg.mxu0
  %195 = vst [vmem:[#allocation2] sm:$0xff] %v165
  %196 = vst [vmem:[#allocation2 + $0x8] sm:$0xff] %v168
  %197 = vst [vmem:[#allocation2 + $0x10] sm:$0xff] %v173
  %198 = vst [vmem:[#allocation2 + $0x18] sm:$0xff] %v176
  %199 = vst [vmem:[#allocation2 + $0x20] sm:$0xff] %v181
  %200 = vst [vmem:[#allocation2 + $0x28] sm:$0xff] %v184
  %201 = vst [vmem:[#allocation2 + $0x30] sm:$0xff] %v189
  %202 = vst [vmem:[#allocation2 + $0x38] sm:$0xff] %v192
  %203 = vst [vmem:[#allocation4] sm:$0xff] 0.0
  %v204 = vld [vmem:[%s2] sm:$0xf]
  %v205 = vld [vmem:[%s2 + $0x4] sm:$0xf]
  %v206 = vld [vmem:[%s2 + $0x8] sm:$0xf]
  %v207 = vld [vmem:[%s2 + $0xc] sm:$0xf]
  %v208 = vld [vmem:[%s2 + $0x10] sm:$0xf]
  %v209 = vld [vmem:[%s2 + $0x14] sm:$0xf]
  %v210 = vld [vmem:[%s2 + $0x18] sm:$0xf]
  %v211 = vld [vmem:[%s2 + $0x1c] sm:$0xf]
  %v212 = vld [vmem:[%s2 + $0x20] sm:$0xf]
  %v213 = vld [vmem:[%s2 + $0x24] sm:$0xf]
  %v214 = vld [vmem:[%s2 + $0x28] sm:$0xf]
  %v215 = vld [vmem:[%s2 + $0x2c] sm:$0xf]
  %v216 = vld [vmem:[%s2 + $0x30] sm:$0xf]
  %v217 = vld [vmem:[%s2 + $0x34] sm:$0xf]
  %v218 = vld [vmem:[%s2 + $0x38] sm:$0xf]
  %v219 = vld [vmem:[%s2 + $0x3c] sm:$0xf]
  %v220 = vld [vmem:[#allocation2] sm:$0xff]
  %v221 = vld [vmem:[#allocation4] sm:$0xff]
  %v222 = vpack.c.bf16 %v221, %v221
  %v239 = vunpack.c.l.b16 %v204
  %v240 = vunpack.c.l.b16 %v205
  %v241 = vunpack.c.l.b16 %v206
  %v242 = vunpack.c.l.b16 %v207
  %v243 = vunpack.c.l.b16 %v208
  %v244 = vunpack.c.l.b16 %v209
  %v245 = vunpack.c.l.b16 %v210
  %v246 = vunpack.c.l.b16 %v211
  %v247 = vunpack.c.l.b16 %v212
  %v248 = vunpack.c.l.b16 %v213
  %v249 = vunpack.c.l.b16 %v214
  %v250 = vunpack.c.l.b16 %v215
  %v251 = vunpack.c.l.b16 %v216
  %v252 = vunpack.c.l.b16 %v217
  %v253 = vunpack.c.l.b16 %v218
  %v254 = vunpack.c.l.b16 %v219
  %v255 = vpack.c.b16 %v240, %v239
  %v256 = vpack.c.b16 %v242, %v241
  %v257 = vpack.c.b16 %v244, %v243
  %v258 = vpack.c.b16 %v246, %v245
  %v259 = vpack.c.b16 %v248, %v247
  %v260 = vpack.c.b16 %v250, %v249
  %v261 = vpack.c.b16 %v252, %v251
  %v262 = vpack.c.b16 %v254, %v253
  %271 = vmatprep.subr.bf16.mxu0 0
  %272 = vmatpush1.bf16.msra.mxu0 %v255
  %273 = vmatprep.subr.bf16.mxu0 0
  %274 = vmatpush1.bf16.msra.mxu0 %v256
  %275 = vmatprep.subr.bf16.mxu0 0
  %276 = vmatpush1.bf16.msra.mxu0 %v257
  %277 = vmatprep.subr.bf16.mxu0 0
  %278 = vmatpush1.bf16.msra.mxu0 %v258
  %279 = vmatprep.subr.bf16.mxu0 0
  %280 = vmatpush1.bf16.msra.mxu0 %v259
  %281 = vmatprep.subr.bf16.mxu0 0
  %282 = vmatpush1.bf16.msra.mxu0 %v260
  %283 = vmatprep.subr.bf16.mxu0 0
  %284 = vmatpush1.bf16.msra.mxu0 %v261
  %285 = vmatprep.subr.bf16.mxu0 0
  %286 = vmatpush1.bf16.msra.mxu0 %v262
  %287 = vmatprep.subr.bf16.mxu0 0
  %288 = vmatpush1.bf16.msra.mxu0 0
  %289 = vmatprep.subr.bf16.mxu0 0
  %290 = vmatpush1.bf16.msra.mxu0 0
  %291 = vmatprep.subr.bf16.mxu0 0
  %292 = vmatpush1.bf16.msra.mxu0 0
  %293 = vmatprep.subr.bf16.mxu0 0
  %294 = vmatpush1.bf16.msra.mxu0 0
  %295 = vmatprep.subr.bf16.mxu0 0
  %296 = vmatpush1.bf16.msra.mxu0 0
  %297 = vmatprep.subr.bf16.mxu0 0
  %298 = vmatpush1.bf16.msra.mxu0 0
  %299 = vmatprep.subr.bf16.mxu0 0
  %300 = vmatpush1.bf16.msra.mxu0 0
  %301 = vmatprep.subr.bf16.mxu0 0
  %302 = vmatpush1.bf16.msra.mxu0 0
  %303 = vmatprep.mubr.bf16.mxu0 0
  %304 = vmatmul.mubr.bf16.gmra.mrb[0].mxu0 %v222
  %v305 = vpop.f32.mrb[0].mxu0
  %v306 = vadd.f32 0.0, %v305
  %v307 = vpop.f32.mrb[0].mxu0
  %v308 = vpop.f32.mrb[0].mxu0
  %v309 = vpop.f32.mrb[0].mxu0
  %310 = vdwg.mxu0
  %v311 = vadd.f32 %v220, %v306
  %v312 = vtanh.pop %v311
  %313 = vst [vmem:[#allocation4] sm:$0xff] %v312
  %314 = vst [vmem:[#allocation3] sm:$0xff] %v312
  %s315 = scalar_lea.vmem [#allocation2], 8
  %v316 = vld [vmem:[%s315] sm:$0xff]
  %v317 = vld [vmem:[#allocation4] sm:$0xff]
  %v318 = vpack.c.bf16 %v317, %v317
  %319 = vmatprep.subr.bf16.mxu0 0
  %320 = vmatpush1.bf16.msra.mxu0 %v255
  %321 = vmatprep.subr.bf16.mxu0 0
  %322 = vmatpush1.bf16.msra.mxu0 %v256
  %323 = vmatprep.subr.bf16.mxu0 0
  %324 = vmatpush1.bf16.msra.mxu0 %v257
  %325 = vmatprep.subr.bf16.mxu0 0
  %326 = vmatpush1.bf16.msra.mxu0 %v258
  %327 = vmatprep.subr.bf16.mxu0 0
  %328 = vmatpush1.bf16.msra.mxu0 %v259
  %329 = vmatprep.subr.bf16.mxu0 0
  %330 = vmatpush1.bf16.msra.mxu0 %v260
  %331 = vmatprep.subr.bf16.mxu0 0
  %332 = vmatpush1.bf16.msra.mxu0 %v261
  %333 = vmatprep.subr.bf16.mxu0 0
  %334 = vmatpush1.bf16.msra.mxu0 %v262
  %335 = vmatprep.subr.bf16.mxu0 0
  %336 = vmatpush1.bf16.msra.mxu0 0
  %337 = vmatprep.subr.bf16.mxu0 0
  %338 = vmatpush1.bf16.msra.mxu0 0
  %339 = vmatprep.subr.bf16.mxu0 0
  %340 = vmatpush1.bf16.msra.mxu0 0
  %341 = vmatprep.subr.bf16.mxu0 0
  %342 = vmatpush1.bf16.msra.mxu0 0
  %343 = vmatprep.subr.bf16.mxu0 0
  %344 = vmatpush1.bf16.msra.mxu0 0
  %345 = vmatprep.subr.bf16.mxu0 0
  %346 = vmatpush1.bf16.msra.mxu0 0
  %347 = vmatprep.subr.bf16.mxu0 0
  %348 = vmatpush1.bf16.msra.mxu0 0
  %349 = vmatprep.subr.bf16.mxu0 0
  %350 = vmatpush1.bf16.msra.mxu0 0
  %351 = vmatprep.mubr.bf16.mxu0 0
  %352 = vmatmul.mubr.bf16.gmra.mrb[0].mxu0 %v318
  %v353 = vpop.f32.mrb[0].mxu0
  %v354 = vadd.f32 0.0, %v353
  %v355 = vpop.f32.mrb[0].mxu0
  %v356 = vpop.f32.mrb[0].mxu0
  %v357 = vpop.f32.mrb[0].mxu0
  %358 = vdwg.mxu0
  %v359 = vadd.f32 %v316, %v354
  %v360 = vtanh.pop %v359
  %361 = vst [vmem:[#allocation4] sm:$0xff] %v360
  %s362 = scalar_lea.vmem [#allocation3], 8
  %363 = vst [vmem:[%s362] sm:$0xff] %v360
  %s364 = scalar_lea.vmem [#allocation2], 16
  %v365 = vld [vmem:[%s364] sm:$0xff]
  %v366 = vld [vmem:[#allocation4] sm:$0xff]
  %v367 = vpack.c.bf16 %v366, %v366
  %368 = vmatprep.subr.bf16.mxu0 0
  %369 = vmatpush1.bf16.msra.mxu0 %v255
  %370 = vmatprep.subr.bf16.mxu0 0
  %371 = vmatpush1.bf16.msra.mxu0 %v256
  %372 = vmatprep.subr.bf16.mxu0 0
  %373 = vmatpush1.bf16.msra.mxu0 %v257
  %374 = vmatprep.subr.bf16.mxu0 0
  %375 = vmatpush1.bf16.msra.mxu0 %v258
  %376 = vmatprep.subr.bf16.mxu0 0
  %377 = vmatpush1.bf16.msra.mxu0 %v259
  %378 = vmatprep.subr.bf16.mxu0 0
  %379 = vmatpush1.bf16.msra.mxu0 %v260
  %380 = vmatprep.subr.bf16.mxu0 0
  %381 = vmatpush1.bf16.msra.mxu0 %v261
  %382 = vmatprep.subr.bf16.mxu0 0
  %383 = vmatpush1.bf16.msra.mxu0 %v262
  %384 = vmatprep.subr.bf16.mxu0 0
  %385 = vmatpush1.bf16.msra.mxu0 0
  %386 = vmatprep.subr.bf16.mxu0 0
  %387 = vmatpush1.bf16.msra.mxu0 0
  %388 = vmatprep.subr.bf16.mxu0 0
  %389 = vmatpush1.bf16.msra.mxu0 0
  %390 = vmatprep.subr.bf16.mxu0 0
  %391 = vmatpush1.bf16.msra.mxu0 0
  %392 = vmatprep.subr.bf16.mxu0 0
  %393 = vmatpush1.bf16.msra.mxu0 0
  %394 = vmatprep.subr.bf16.mxu0 0
  %395 = vmatpush1.bf16.msra.mxu0 0
  %396 = vmatprep.subr.bf16.mxu0 0
  %397 = vmatpush1.bf16.msra.mxu0 0
  %398 = vmatprep.subr.bf16.mxu0 0
  %399 = vmatpush1.bf16.msra.mxu0 0
  %400 = vmatprep.mubr.bf16.mxu0 0
  %401 = vmatmul.mubr.bf16.gmra.mrb[0].mxu0 %v367
  %v402 = vpop.f32.mrb[0].mxu0
  %v403 = vadd.f32 0.0, %v402
  %v404 = vpop.f32.mrb[0].mxu0
  %v405 = vpop.f32.mrb[0].mxu0
  %v406 = vpop.f32.mrb[0].mxu0
  %407 = vdwg.mxu0
  %v408 = vadd.f32 %v365, %v403
  %v409 = vtanh.pop %v408
  %410 = vst [vmem:[#allocation4] sm:$0xff] %v409
  %s411 = scalar_lea.vmem [#allocation3], 16
  %412 = vst [vmem:[%s411] sm:$0xff] %v409
  %s413 = scalar_lea.vmem [#allocation2], 24
  %v414 = vld [vmem:[%s413] sm:$0xff]
  %v415 = vld [vmem:[#allocation4] sm:$0xff]
  %v416 = vpack.c.bf16 %v415, %v415
  %417 = vmatprep.subr.bf16.mxu0 0
  %418 = vmatpush1.bf16.msra.mxu0 %v255
  %419 = vmatprep.subr.bf16.mxu0 0
  %420 = vmatpush1.bf16.msra.mxu0 %v256
  %421 = vmatprep.subr.bf16.mxu0 0
  %422 = vmatpush1.bf16.msra.mxu0 %v257
  %423 = vmatprep.subr.bf16.mxu0 0
  %424 = vmatpush1.bf16.msra.mxu0 %v258
  %425 = vmatprep.subr.bf16.mxu0 0
  %426 = vmatpush1.bf16.msra.mxu0 %v259
  %427 = vmatprep.subr.bf16.mxu0 0
  %428 = vmatpush1.bf16.msra.mxu0 %v260
  %429 = vmatprep.subr.bf16.mxu0 0
  %430 = vmatpush1.bf16.msra.mxu0 %v261
  %431 = vmatprep.subr.bf16.mxu0 0
  %432 = vmatpush1.bf16.msra.mxu0 %v262
  %433 = vmatprep.subr.bf16.mxu0 0
  %434 = vmatpush1.bf16.msra.mxu0 0
  %435 = vmatprep.subr.bf16.mxu0 0
  %436 = vmatpush1.bf16.msra.mxu0 0
  %437 = vmatprep.subr.bf16.mxu0 0
  %438 = vmatpush1.bf16.msra.mxu0 0
  %439 = vmatprep.subr.bf16.mxu0 0
  %440 = vmatpush1.bf16.msra.mxu0 0
  %441 = vmatprep.subr.bf16.mxu0 0
  %442 = vmatpush1.bf16.msra.mxu0 0
  %443 = vmatprep.subr.bf16.mxu0 0
  %444 = vmatpush1.bf16.msra.mxu0 0
  %445 = vmatprep.subr.bf16.mxu0 0
  %446 = vmatpush1.bf16.msra.mxu0 0
  %447 = vmatprep.subr.bf16.mxu0 0
  %448 = vmatpush1.bf16.msra.mxu0 0
  %449 = vmatprep.mubr.bf16.mxu0 0
  %450 = vmatmul.mubr.bf16.gmra.mrb[0].mxu0 %v416
  %v451 = vpop.f32.mrb[0].mxu0
  %v452 = vadd.f32 0.0, %v451
  %v453 = vpop.f32.mrb[0].mxu0
  %v454 = vpop.f32.mrb[0].mxu0
  %v455 = vpop.f32.mrb[0].mxu0
  %456 = vdwg.mxu0
  %v457 = vadd.f32 %v414, %v452
  %v458 = vtanh.pop %v457
  %459 = vst [vmem:[#allocation4] sm:$0xff] %v458
  %s460 = scalar_lea.vmem [#allocation3], 24
  %461 = vst [vmem:[%s460] sm:$0xff] %v458
  %s462 = scalar_lea.vmem [#allocation2], 32
  %v463 = vld [vmem:[%s462] sm:$0xff]
  %v464 = vld [vmem:[#allocation4] sm:$0xff]
  %v465 = vpack.c.bf16 %v464, %v464
  %466 = vmatprep.subr.bf16.mxu0 0
  %467 = vmatpush1.bf16.msra.mxu0 %v255
  %468 = vmatprep.subr.bf16.mxu0 0
  %469 = vmatpush1.bf16.msra.mxu0 %v256
  %470 = vmatprep.subr.bf16.mxu0 0
  %471 = vmatpush1.bf16.msra.mxu0 %v257
  %472 = vmatprep.subr.bf16.mxu0 0
  %473 = vmatpush1.bf16.msra.mxu0 %v258
  %474 = vmatprep.subr.bf16.mxu0 0
  %475 = vmatpush1.bf16.msra.mxu0 %v259
  %476 = vmatprep.subr.bf16.mxu0 0
  %477 = vmatpush1.bf16.msra.mxu0 %v260
  %478 = vmatprep.subr.bf16.mxu0 0
  %479 = vmatpush1.bf16.msra.mxu0 %v261
  %480 = vmatprep.subr.bf16.mxu0 0
  %481 = vmatpush1.bf16.msra.mxu0 %v262
  %482 = vmatprep.subr.bf16.mxu0 0
  %483 = vmatpush1.bf16.msra.mxu0 0
  %484 = vmatprep.subr.bf16.mxu0 0
  %485 = vmatpush1.bf16.msra.mxu0 0
  %486 = vmatprep.subr.bf16.mxu0 0
  %487 = vmatpush1.bf16.msra.mxu0 0
  %488 = vmatprep.subr.bf16.mxu0 0
  %489 = vmatpush1.bf16.msra.mxu0 0
  %490 = vmatprep.subr.bf16.mxu0 0
  %491 = vmatpush1.bf16.msra.mxu0 0
  %492 = vmatprep.subr.bf16.mxu0 0
  %493 = vmatpush1.bf16.msra.mxu0 0
  %494 = vmatprep.subr.bf16.mxu0 0
  %495 = vmatpush1.bf16.msra.mxu0 0
  %496 = vmatprep.subr.bf16.mxu0 0
  %497 = vmatpush1.bf16.msra.mxu0 0
  %498 = vmatprep.mubr.bf16.mxu0 0
  %499 = vmatmul.mubr.bf16.gmra.mrb[0].mxu0 %v465
  %v500 = vpop.f32.mrb[0].mxu0
  %v501 = vadd.f32 0.0, %v500
  %v502 = vpop.f32.mrb[0].mxu0
  %v503 = vpop.f32.mrb[0].mxu0
  %v504 = vpop.f32.mrb[0].mxu0
  %505 = vdwg.mxu0
  %v506 = vadd.f32 %v463, %v501
  %v507 = vtanh.pop %v506
  %508 = vst [vmem:[#allocation4] sm:$0xff] %v507
  %s509 = scalar_lea.vmem [#allocation3], 32
  %510 = vst [vmem:[%s509] sm:$0xff] %v507
  %s511 = scalar_lea.vmem [#allocation2], 40
  %v512 = vld [vmem:[%s511] sm:$0xff]
  %v513 = vld [vmem:[#allocation4] sm:$0xff]
  %v514 = vpack.c.bf16 %v513, %v513
  %515 = vmatprep.subr.bf16.mxu0 0
  %516 = vmatpush1.bf16.msra.mxu0 %v255
  %517 = vmatprep.subr.bf16.mxu0 0
  %518 = vmatpush1.bf16.msra.mxu0 %v256
  %519 = vmatprep.subr.bf16.mxu0 0
  %520 = vmatpush1.bf16.msra.mxu0 %v257
  %521 = vmatprep.subr.bf16.mxu0 0
  %522 = vmatpush1.bf16.msra.mxu0 %v258
  %523 = vmatprep.subr.bf16.mxu0 0
  %524 = vmatpush1.bf16.msra.mxu0 %v259
  %525 = vmatprep.subr.bf16.mxu0 0
  %526 = vmatpush1.bf16.msra.mxu0 %v260
  %527 = vmatprep.subr.bf16.mxu0 0
  %528 = vmatpush1.bf16.msra.mxu0 %v261
  %529 = vmatprep.subr.bf16.mxu0 0
  %530 = vmatpush1.bf16.msra.mxu0 %v262
  %531 = vmatprep.subr.bf16.mxu0 0
  %532 = vmatpush1.bf16.msra.mxu0 0
  %533 = vmatprep.subr.bf16.mxu0 0
  %534 = vmatpush1.bf16.msra.mxu0 0
  %535 = vmatprep.subr.bf16.mxu0 0
  %536 = vmatpush1.bf16.msra.mxu0 0
  %537 = vmatprep.subr.bf16.mxu0 0
  %538 = vmatpush1.bf16.msra.mxu0 0
  %539 = vmatprep.subr.bf16.mxu0 0
  %540 = vmatpush1.bf16.msra.mxu0 0
  %541 = vmatprep.subr.bf16.mxu0 0
  %542 = vmatpush1.bf16.msra.mxu0 0
  %543 = vmatprep.subr.bf16.mxu0 0
  %544 = vmatpush1.bf16.msra.mxu0 0
  %545 = vmatprep.subr.bf16.mxu0 0
  %546 = vmatpush1.bf16.msra.mxu0 0
  %547 = vmatprep.mubr.bf16.mxu0 0
  %548 = vmatmul.mubr.bf16.gmra.mrb[0].mxu0 %v514
  %v549 = vpop.f32.mrb[0].mxu0
  %v550 = vadd.f32 0.0, %v549
  %v551 = vpop.f32.mrb[0].mxu0
  %v552 = vpop.f32.mrb[0].mxu0
  %v553 = vpop.f32.mrb[0].mxu0
  %554 = vdwg.mxu0
  %v555 = vadd.f32 %v512, %v550
  %v556 = vtanh.pop %v555
  %557 = vst [vmem:[#allocation4] sm:$0xff] %v556
  %s558 = scalar_lea.vmem [#allocation3], 40
  %559 = vst [vmem:[%s558] sm:$0xff] %v556
  %s560 = scalar_lea.vmem [#allocation2], 48
  %v561 = vld [vmem:[%s560] sm:$0xff]
  %v562 = vld [vmem:[#allocation4] sm:$0xff]
  %v563 = vpack.c.bf16 %v562, %v562
  %564 = vmatprep.subr.bf16.mxu0 0
  %565 = vmatpush1.bf16.msra.mxu0 %v255
  %566 = vmatprep.subr.bf16.mxu0 0
  %567 = vmatpush1.bf16.msra.mxu0 %v256
  %568 = vmatprep.subr.bf16.mxu0 0
  %569 = vmatpush1.bf16.msra.mxu0 %v257
  %570 = vmatprep.subr.bf16.mxu0 0
  %571 = vmatpush1.bf16.msra.mxu0 %v258
  %572 = vmatprep.subr.bf16.mxu0 0
  %573 = vmatpush1.bf16.msra.mxu0 %v259
  %574 = vmatprep.subr.bf16.mxu0 0
  %575 = vmatpush1.bf16.msra.mxu0 %v260
  %576 = vmatprep.subr.bf16.mxu0 0
  %577 = vmatpush1.bf16.msra.mxu0 %v261
  %578 = vmatprep.subr.bf16.mxu0 0
  %579 = vmatpush1.bf16.msra.mxu0 %v262
  %580 = vmatprep.subr.bf16.mxu0 0
  %581 = vmatpush1.bf16.msra.mxu0 0
  %582 = vmatprep.subr.bf16.mxu0 0
  %583 = vmatpush1.bf16.msra.mxu0 0
  %584 = vmatprep.subr.bf16.mxu0 0
  %585 = vmatpush1.bf16.msra.mxu0 0
  %586 = vmatprep.subr.bf16.mxu0 0
  %587 = vmatpush1.bf16.msra.mxu0 0
  %588 = vmatprep.subr.bf16.mxu0 0
  %589 = vmatpush1.bf16.msra.mxu0 0
  %590 = vmatprep.subr.bf16.mxu0 0
  %591 = vmatpush1.bf16.msra.mxu0 0
  %592 = vmatprep.subr.bf16.mxu0 0
  %593 = vmatpush1.bf16.msra.mxu0 0
  %594 = vmatprep.subr.bf16.mxu0 0
  %595 = vmatpush1.bf16.msra.mxu0 0
  %596 = vmatprep.mubr.bf16.mxu0 0
  %597 = vmatmul.mubr.bf16.gmra.mrb[0].mxu0 %v563
  %v598 = vpop.f32.mrb[0].mxu0
  %v599 = vadd.f32 0.0, %v598
  %v600 = vpop.f32.mrb[0].mxu0
  %v601 = vpop.f32.mrb[0].mxu0
  %v602 = vpop.f32.mrb[0].mxu0
  %603 = vdwg.mxu0
  %v604 = vadd.f32 %v561, %v599
  %v605 = vtanh.pop %v604
  %606 = vst [vmem:[#allocation4] sm:$0xff] %v605
  %s607 = scalar_lea.vmem [#allocation3], 48
  %608 = vst [vmem:[%s607] sm:$0xff] %v605
  %s609 = scalar_lea.vmem [#allocation2], 56
  %v610 = vld [vmem:[%s609] sm:$0xff]
  %v611 = vld [vmem:[#allocation4] sm:$0xff]
  %v612 = vpack.c.bf16 %v611, %v611
  %613 = vmatprep.subr.bf16.mxu0 0
  %614 = vmatpush1.bf16.msra.mxu0 %v255
  %615 = vmatprep.subr.bf16.mxu0 0
  %616 = vmatpush1.bf16.msra.mxu0 %v256
  %617 = vmatprep.subr.bf16.mxu0 0
  %618 = vmatpush1.bf16.msra.mxu0 %v257
  %619 = vmatprep.subr.bf16.mxu0 0
  %620 = vmatpush1.bf16.msra.mxu0 %v258
  %621 = vmatprep.subr.bf16.mxu0 0
  %622 = vmatpush1.bf16.msra.mxu0 %v259
  %623 = vmatprep.subr.bf16.mxu0 0
  %624 = vmatpush1.bf16.msra.mxu0 %v260
  %625 = vmatprep.subr.bf16.mxu0 0
  %626 = vmatpush1.bf16.msra.mxu0 %v261
  %627 = vmatprep.subr.bf16.mxu0 0
  %628 = vmatpush1.bf16.msra.mxu0 %v262
  %629 = vmatprep.subr.bf16.mxu0 0
  %630 = vmatpush1.bf16.msra.mxu0 0
  %631 = vmatprep.subr.bf16.mxu0 0
  %632 = vmatpush1.bf16.msra.mxu0 0
  %633 = vmatprep.subr.bf16.mxu0 0
  %634 = vmatpush1.bf16.msra.mxu0 0
  %635 = vmatprep.subr.bf16.mxu0 0
  %636 = vmatpush1.bf16.msra.mxu0 0
  %637 = vmatprep.subr.bf16.mxu0 0
  %638 = vmatpush1.bf16.msra.mxu0 0
  %639 = vmatprep.subr.bf16.mxu0 0
  %640 = vmatpush1.bf16.msra.mxu0 0
  %641 = vmatprep.subr.bf16.mxu0 0
  %642 = vmatpush1.bf16.msra.mxu0 0
  %643 = vmatprep.subr.bf16.mxu0 0
  %644 = vmatpush1.bf16.msra.mxu0 0
  %645 = vmatprep.mubr.bf16.mxu0 0
  %646 = vmatmul.mubr.bf16.gmra.mrb[0].mxu0 %v612
  %v647 = vpop.f32.mrb[0].mxu0
  %v648 = vadd.f32 0.0, %v647
  %v649 = vpop.f32.mrb[0].mxu0
  %v650 = vpop.f32.mrb[0].mxu0
  %v651 = vpop.f32.mrb[0].mxu0
  %652 = vdwg.mxu0
  %v653 = vadd.f32 %v610, %v648
  %v654 = vtanh.pop %v653
  %655 = vst [vmem:[#allocation4] sm:$0xff] %v654
  %s656 = scalar_lea.vmem [#allocation3], 56
  %657 = vst [vmem:[%s656] sm:$0xff] %v654
  %v658 = vld [vmem:[#allocation3] sm:$0xff]
  %v659 = vld [vmem:[#allocation3 + $0x8] sm:$0xff]
  %v660 = vld [vmem:[#allocation3 + $0x10] sm:$0xff]
  %v661 = vld [vmem:[#allocation3 + $0x18] sm:$0xff]
  %v662 = vld [vmem:[#allocation3 + $0x20] sm:$0xff]
  %v663 = vld [vmem:[#allocation3 + $0x28] sm:$0xff]
  %v664 = vld [vmem:[#allocation3 + $0x30] sm:$0xff]
  %v665 = vld [vmem:[#allocation3 + $0x38] sm:$0xff]
  %v666 = vpack.c.bf16 %v658, %v658
  %v667 = vpack.c.bf16 %v659, %v659
  %v668 = vpack.c.bf16 %v660, %v660
  %v669 = vpack.c.bf16 %v661, %v661
  %v670 = vpack.c.bf16 %v662, %v662
  %v671 = vpack.c.bf16 %v663, %v663
  %v672 = vpack.c.bf16 %v664, %v664
  %v673 = vpack.c.bf16 %v665, %v665
  %v674 = vld [vmem:[%s4] sm:$0xf]
  %v675 = vld [vmem:[%s4 + $0x4] sm:$0xf]
  %v676 = vld [vmem:[%s4 + $0x8] sm:$0xf]
  %v677 = vld [vmem:[%s4 + $0xc] sm:$0xf]
  %v678 = vld [vmem:[%s4 + $0x10] sm:$0xf]
  %v679 = vld [vmem:[%s4 + $0x14] sm:$0xf]
  %v680 = vld [vmem:[%s4 + $0x18] sm:$0xf]
  %v681 = vld [vmem:[%s4 + $0x1c] sm:$0xf]
  %v682 = vld [vmem:[%s4 + $0x20] sm:$0xf]
  %v683 = vld [vmem:[%s4 + $0x24] sm:$0xf]
  %v684 = vld [vmem:[%s4 + $0x28] sm:$0xf]
  %v685 = vld [vmem:[%s4 + $0x2c] sm:$0xf]
  %v686 = vld [vmem:[%s4 + $0x30] sm:$0xf]
  %v687 = vld [vmem:[%s4 + $0x34] sm:$0xf]
  %v688 = vld [vmem:[%s4 + $0x38] sm:$0xf]
  %v689 = vld [vmem:[%s4 + $0x3c] sm:$0xf]
  %v690 = vld [vmem:[%s6] sm:$0x1]
  %v692 = vlaneseq
  %v693 = vshrl.u32 %v692, 7
  %v694 = vsub.s32 0, %v693
  %v695 = vrot.slane %v690, %v694
  %v705 = vunpack.c.l.b16 %v666
  %v706 = vunpack.c.l.b16 %v667
  %v707 = vunpack.c.l.b16 %v668
  %v708 = vunpack.c.l.b16 %v669
  %v709 = vunpack.c.l.b16 %v670
  %v710 = vunpack.c.l.b16 %v671
  %v711 = vunpack.c.l.b16 %v672
  %v712 = vunpack.c.l.b16 %v673
  %v713 = vpack.c.b16 %v706, %v705
  %v714 = vpack.c.b16 %v708, %v707
  %v715 = vpack.c.b16 %v710, %v709
  %v716 = vpack.c.b16 %v712, %v711
  %v737 = vunpack.c.l.b16 %v674
  %v738 = vunpack.c.l.b16 %v675
  %v739 = vunpack.c.l.b16 %v676
  %v740 = vunpack.c.l.b16 %v677
  %v741 = vunpack.c.l.b16 %v678
  %v742 = vunpack.c.l.b16 %v679
  %v743 = vunpack.c.l.b16 %v680
  %v744 = vunpack.c.l.b16 %v681
  %v745 = vunpack.c.l.b16 %v682
  %v746 = vunpack.c.l.b16 %v683
  %v747 = vunpack.c.l.b16 %v684
  %v748 = vunpack.c.l.b16 %v685
  %v749 = vunpack.c.l.b16 %v686
  %v750 = vunpack.c.l.b16 %v687
  %v751 = vunpack.c.l.b16 %v688
  %v752 = vunpack.c.l.b16 %v689
  %v753 = vpack.c.b16 %v738, %v737
  %v754 = vpack.c.b16 %v740, %v739
  %v755 = vpack.c.b16 %v742, %v741
  %v756 = vpack.c.b16 %v744, %v743
  %v757 = vpack.c.b16 %v746, %v745
  %v758 = vpack.c.b16 %v748, %v747
  %v759 = vpack.c.b16 %v750, %v749
  %v760 = vpack.c.b16 %v752, %v751
  %769 = vmatprep.subr.bf16.mxu0 0
  %770 = vmatpush1.bf16.msra.mxu0 %v753
  %771 = vmatprep.subr.bf16.mxu0 0
  %772 = vmatpush1.bf16.msra.mxu0 %v754
  %773 = vmatprep.subr.bf16.mxu0 0
  %774 = vmatpush1.bf16.msra.mxu0 %v755
  %775 = vmatprep.subr.bf16.mxu0 0
  %776 = vmatpush1.bf16.msra.mxu0 %v756
  %777 = vmatprep.subr.bf16.mxu0 0
  %778 = vmatpush1.bf16.msra.mxu0 %v757
  %779 = vmatprep.subr.bf16.mxu0 0
  %780 = vmatpush1.bf16.msra.mxu0 %v758
  %781 = vmatprep.subr.bf16.mxu0 0
  %782 = vmatpush1.bf16.msra.mxu0 %v759
  %783 = vmatprep.subr.bf16.mxu0 0
  %784 = vmatpush1.bf16.msra.mxu0 %v760
  %785 = vmatprep.subr.bf16.mxu0 0
  %786 = vmatpush1.bf16.msra.mxu0 0
  %787 = vmatprep.subr.bf16.mxu0 0
  %788 = vmatpush1.bf16.msra.mxu0 0
  %789 = vmatprep.subr.bf16.mxu0 0
  %790 = vmatpush1.bf16.msra.mxu0 0
  %791 = vmatprep.subr.bf16.mxu0 0
  %792 = vmatpush1.bf16.msra.mxu0 0
  %793 = vmatprep.subr.bf16.mxu0 0
  %794 = vmatpush1.bf16.msra.mxu0 0
  %795 = vmatprep.subr.bf16.mxu0 0
  %796 = vmatpush1.bf16.msra.mxu0 0
  %797 = vmatprep.subr.bf16.mxu0 0
  %798 = vmatpush1.bf16.msra.mxu0 0
  %799 = vmatprep.subr.bf16.mxu0 0
  %800 = vmatpush1.bf16.msra.mxu0 0
  %801 = vmatprep.mubr.bf16.mxu0 0
  %802 = vmatmul.mubr.bf16.gmra.mrb[0].mxu0 %v713
  %v803 = vpop.f32.mrb[0].mxu0
  %v804 = vadd.f32 %v695, %v803
  %v805 = vpop.f32.mrb[0].mxu0
  %v806 = vpop.f32.mrb[0].mxu0
  %v807 = vadd.f32 %v695, %v806
  %v808 = vpop.f32.mrb[0].mxu0
  %809 = vmatprep.mubr.bf16.mxu0 0
  %810 = vmatmul.mubr.bf16.gmra.mrb[0].mxu0 %v714
  %v811 = vpop.f32.mrb[0].mxu0
  %v812 = vadd.f32 %v695, %v811
  %v813 = vpop.f32.mrb[0].mxu0
  %v814 = vpop.f32.mrb[0].mxu0
  %v815 = vadd.f32 %v695, %v814
  %v816 = vpop.f32.mrb[0].mxu0
  %817 = vmatprep.mubr.bf16.mxu0 0
  %818 = vmatmul.mubr.bf16.gmra.mrb[0].mxu0 %v715
  %v819 = vpop.f32.mrb[0].mxu0
  %v820 = vadd.f32 %v695, %v819
  %v821 = vpop.f32.mrb[0].mxu0
  %v822 = vpop.f32.mrb[0].mxu0
  %v823 = vadd.f32 %v695, %v822
  %v824 = vpop.f32.mrb[0].mxu0
  %825 = vmatprep.mubr.bf16.mxu0 0
  %826 = vmatmul.mubr.bf16.gmra.mrb[0].mxu0 %v716
  %v827 = vpop.f32.mrb[0].mxu0
  %v828 = vadd.f32 %v695, %v827
  %v829 = vpop.f32.mrb[0].mxu0
  %v830 = vpop.f32.mrb[0].mxu0
  %v831 = vadd.f32 %v695, %v830
  %v832 = vpop.f32.mrb[0].mxu0
  %833 = vdwg.mxu0
  %834 = vst [vmem:[#allocation2] sm:$0xff] %v804
  %835 = vst [vmem:[#allocation2 + $0x8] sm:$0xff] %v807
  %836 = vst [vmem:[#allocation2 + $0x10] sm:$0xff] %v812
  %837 = vst [vmem:[#allocation2 + $0x18] sm:$0xff] %v815
  %838 = vst [vmem:[#allocation2 + $0x20] sm:$0xff] %v820
  %839 = vst [vmem:[#allocation2 + $0x28] sm:$0xff] %v823
  %840 = vst [vmem:[#allocation2 + $0x30] sm:$0xff] %v828
  %841 = vst [vmem:[#allocation2 + $0x38] sm:$0xff] %v831
  %842 = vst [vmem:[#allocation4] sm:$0xff] 0.0
  %v843 = vld [vmem:[%s5] sm:$0xf]
  %v844 = vld [vmem:[%s5 + $0x4] sm:$0xf]
  %v845 = vld [vmem:[%s5 + $0x8] sm:$0xf]
  %v846 = vld [vmem:[%s5 + $0xc] sm:$0xf]
  %v847 = vld [vmem:[%s5 + $0x10] sm:$0xf]
  %v848 = vld [vmem:[%s5 + $0x14] sm:$0xf]
  %v849 = vld [vmem:[%s5 + $0x18] sm:$0xf]
  %v850 = vld [vmem:[%s5 + $0x1c] sm:$0xf]
  %v851 = vld [vmem:[%s5 + $0x20] sm:$0xf]
  %v852 = vld [vmem:[%s5 + $0x24] sm:$0xf]
  %v853 = vld [vmem:[%s5 + $0x28] sm:$0xf]
  %v854 = vld [vmem:[%s5 + $0x2c] sm:$0xf]
  %v855 = vld [vmem:[%s5 + $0x30] sm:$0xf]
  %v856 = vld [vmem:[%s5 + $0x34] sm:$0xf]
  %v857 = vld [vmem:[%s5 + $0x38] sm:$0xf]
  %v858 = vld [vmem:[%s5 + $0x3c] sm:$0xf]
  %v859 = vld [vmem:[#allocation2] sm:$0xff]
  %v860 = vld [vmem:[#allocation4] sm:$0xff]
  %v861 = vpack.c.bf16 %v860, %v860
  %v878 = vunpack.c.l.b16 %v843
  %v879 = vunpack.c.l.b16 %v844
  %v880 = vunpack.c.l.b16 %v845
  %v881 = vunpack.c.l.b16 %v846
  %v882 = vunpack.c.l.b16 %v847
  %v883 = vunpack.c.l.b16 %v848
  %v884 = vunpack.c.l.b16 %v849
  %v885 = vunpack.c.l.b16 %v850
  %v886 = vunpack.c.l.b16 %v851
  %v887 = vunpack.c.l.b16 %v852
  %v888 = vunpack.c.l.b16 %v853
  %v889 = vunpack.c.l.b16 %v854
  %v890 = vunpack.c.l.b16 %v855
  %v891 = vunpack.c.l.b16 %v856
  %v892 = vunpack.c.l.b16 %v857
  %v893 = vunpack.c.l.b16 %v858
  %v894 = vpack.c.b16 %v879, %v878
  %v895 = vpack.c.b16 %v881, %v880
  %v896 = vpack.c.b16 %v883, %v882
  %v897 = vpack.c.b16 %v885, %v884
  %v898 = vpack.c.b16 %v887, %v886
  %v899 = vpack.c.b16 %v889, %v888
  %v900 = vpack.c.b16 %v891, %v890
  %v901 = vpack.c.b16 %v893, %v892
  %910 = vmatprep.subr.bf16.mxu0 0
  %911 = vmatpush1.bf16.msra.mxu0 %v894
  %912 = vmatprep.subr.bf16.mxu0 0
  %913 = vmatpush1.bf16.msra.mxu0 %v895
  %914 = vmatprep.subr.bf16.mxu0 0
  %915 = vmatpush1.bf16.msra.mxu0 %v896
  %916 = vmatprep.subr.bf16.mxu0 0
  %917 = vmatpush1.bf16.msra.mxu0 %v897
  %918 = vmatprep.subr.bf16.mxu0 0
  %919 = vmatpush1.bf16.msra.mxu0 %v898
  %920 = vmatprep.subr.bf16.mxu0 0
  %921 = vmatpush1.bf16.msra.mxu0 %v899
  %922 = vmatprep.subr.bf16.mxu0 0
  %923 = vmatpush1.bf16.msra.mxu0 %v900
  %924 = vmatprep.subr.bf16.mxu0 0
  %925 = vmatpush1.bf16.msra.mxu0 %v901
  %926 = vmatprep.subr.bf16.mxu0 0
  %927 = vmatpush1.bf16.msra.mxu0 0
  %928 = vmatprep.subr.bf16.mxu0 0
  %929 = vmatpush1.bf16.msra.mxu0 0
  %930 = vmatprep.subr.bf16.mxu0 0
  %931 = vmatpush1.bf16.msra.mxu0 0
  %932 = vmatprep.subr.bf16.mxu0 0
  %933 = vmatpush1.bf16.msra.mxu0 0
  %934 = vmatprep.subr.bf16.mxu0 0
  %935 = vmatpush1.bf16.msra.mxu0 0
  %936 = vmatprep.subr.bf16.mxu0 0
  %937 = vmatpush1.bf16.msra.mxu0 0
  %938 = vmatprep.subr.bf16.mxu0 0
  %939 = vmatpush1.bf16.msra.mxu0 0
  %940 = vmatprep.subr.bf16.mxu0 0
  %941 = vmatpush1.bf16.msra.mxu0 0
  %942 = vmatprep.mubr.bf16.mxu0 0
  %943 = vmatmul.mubr.bf16.gmra.mrb[0].mxu0 %v861
  %v944 = vpop.f32.mrb[0].mxu0
  %v945 = vadd.f32 0.0, %v944
  %v946 = vpop.f32.mrb[0].mxu0
  %v947 = vpop.f32.mrb[0].mxu0
  %v948 = vpop.f32.mrb[0].mxu0
  %949 = vdwg.mxu0
  %v950 = vadd.f32 %v859, %v945
  %v951 = vtanh.pop %v950
  %952 = vst [vmem:[#allocation4] sm:$0xff] %v951
  %v953 = vld [vmem:[%s315] sm:$0xff]
  %v954 = vld [vmem:[#allocation4] sm:$0xff]
  %v955 = vpack.c.bf16 %v954, %v954
  %956 = vmatprep.subr.bf16.mxu0 0
  %957 = vmatpush1.bf16.msra.mxu0 %v894
  %958 = vmatprep.subr.bf16.mxu0 0
  %959 = vmatpush1.bf16.msra.mxu0 %v895
  %960 = vmatprep.subr.bf16.mxu0 0
  %961 = vmatpush1.bf16.msra.mxu0 %v896
  %962 = vmatprep.subr.bf16.mxu0 0
  %963 = vmatpush1.bf16.msra.mxu0 %v897
  %964 = vmatprep.subr.bf16.mxu0 0
  %965 = vmatpush1.bf16.msra.mxu0 %v898
  %966 = vmatprep.subr.bf16.mxu0 0
  %967 = vmatpush1.bf16.msra.mxu0 %v899
  %968 = vmatprep.subr.bf16.mxu0 0
  %969 = vmatpush1.bf16.msra.mxu0 %v900
  %970 = vmatprep.subr.bf16.mxu0 0
  %971 = vmatpush1.bf16.msra.mxu0 %v901
  %972 = vmatprep.subr.bf16.mxu0 0
  %973 = vmatpush1.bf16.msra.mxu0 0
  %974 = vmatprep.subr.bf16.mxu0 0
  %975 = vmatpush1.bf16.msra.mxu0 0
  %976 = vmatprep.subr.bf16.mxu0 0
  %977 = vmatpush1.bf16.msra.mxu0 0
  %978 = vmatprep.subr.bf16.mxu0 0
  %979 = vmatpush1.bf16.msra.mxu0 0
  %980 = vmatprep.subr.bf16.mxu0 0
  %981 = vmatpush1.bf16.msra.mxu0 0
  %982 = vmatprep.subr.bf16.mxu0 0
  %983 = vmatpush1.bf16.msra.mxu0 0
  %984 = vmatprep.subr.bf16.mxu0 0
  %985 = vmatpush1.bf16.msra.mxu0 0
  %986 = vmatprep.subr.bf16.mxu0 0
  %987 = vmatpush1.bf16.msra.mxu0 0
  %988 = vmatprep.mubr.bf16.mxu0 0
  %989 = vmatmul.mubr.bf16.gmra.mrb[0].mxu0 %v955
  %v990 = vpop.f32.mrb[0].mxu0
  %v991 = vadd.f32 0.0, %v990
  %v992 = vpop.f32.mrb[0].mxu0
  %v993 = vpop.f32.mrb[0].mxu0
  %v994 = vpop.f32.mrb[0].mxu0
  %995 = vdwg.mxu0
  %v996 = vadd.f32 %v953, %v991
  %v997 = vtanh.pop %v996
  %998 = vst [vmem:[#allocation4] sm:$0xff] %v997
  %v999 = vld [vmem:[%s364] sm:$0xff]
  %v1000 = vld [vmem:[#allocation4] sm:$0xff]
  %v1001 = vpack.c.bf16 %v1000, %v1000
  %1002 = vmatprep.subr.bf16.mxu0 0
  %1003 = vmatpush1.bf16.msra.mxu0 %v894
  %1004 = vmatprep.subr.bf16.mxu0 0
  %1005 = vmatpush1.bf16.msra.mxu0 %v895
  %1006 = vmatprep.subr.bf16.mxu0 0
  %1007 = vmatpush1.bf16.msra.mxu0 %v896
  %1008 = vmatprep.subr.bf16.mxu0 0
  %1009 = vmatpush1.bf16.msra.mxu0 %v897
  %1010 = vmatprep.subr.bf16.mxu0 0
  %1011 = vmatpush1.bf16.msra.mxu0 %v898
  %1012 = vmatprep.subr.bf16.mxu0 0
  %1013 = vmatpush1.bf16.msra.mxu0 %v899
  %1014 = vmatprep.subr.bf16.mxu0 0
  %1015 = vmatpush1.bf16.msra.mxu0 %v900
  %1016 = vmatprep.subr.bf16.mxu0 0
  %1017 = vmatpush1.bf16.msra.mxu0 %v901
  %1018 = vmatprep.subr.bf16.mxu0 0
  %1019 = vmatpush1.bf16.msra.mxu0 0
  %1020 = vmatprep.subr.bf16.mxu0 0
  %1021 = vmatpush1.bf16.msra.mxu0 0
  %1022 = vmatprep.subr.bf16.mxu0 0
  %1023 = vmatpush1.bf16.msra.mxu0 0
  %1024 = vmatprep.subr.bf16.mxu0 0
  %1025 = vmatpush1.bf16.msra.mxu0 0
  %1026 = vmatprep.subr.bf16.mxu0 0
  %1027 = vmatpush1.bf16.msra.mxu0 0
  %1028 = vmatprep.subr.bf16.mxu0 0
  %1029 = vmatpush1.bf16.msra.mxu0 0
  %1030 = vmatprep.subr.bf16.mxu0 0
  %1031 = vmatpush1.bf16.msra.mxu0 0
  %1032 = vmatprep.subr.bf16.mxu0 0
  %1033 = vmatpush1.bf16.msra.mxu0 0
  %1034 = vmatprep.mubr.bf16.mxu0 0
  %1035 = vmatmul.mubr.bf16.gmra.mrb[0].mxu0 %v1001
  %v1036 = vpop.f32.mrb[0].mxu0
  %v1037 = vadd.f32 0.0, %v1036
  %v1038 = vpop.f32.mrb[0].mxu0
  %v1039 = vpop.f32.mrb[0].mxu0
  %v1040 = vpop.f32.mrb[0].mxu0
  %1041 = vdwg.mxu0
  %v1042 = vadd.f32 %v999, %v1037
  %v1043 = vtanh.pop %v1042
  %1044 = vst [vmem:[#allocation4] sm:$0xff] %v1043
  %v1045 = vld [vmem:[%s413] sm:$0xff]
  %v1046 = vld [vmem:[#allocation4] sm:$0xff]
  %v1047 = vpack.c.bf16 %v1046, %v1046
  %1048 = vmatprep.subr.bf16.mxu0 0
  %1049 = vmatpush1.bf16.msra.mxu0 %v894
  %1050 = vmatprep.subr.bf16.mxu0 0
  %1051 = vmatpush1.bf16.msra.mxu0 %v895
  %1052 = vmatprep.subr.bf16.mxu0 0
  %1053 = vmatpush1.bf16.msra.mxu0 %v896
  %1054 = vmatprep.subr.bf16.mxu0 0
  %1055 = vmatpush1.bf16.msra.mxu0 %v897
  %1056 = vmatprep.subr.bf16.mxu0 0
  %1057 = vmatpush1.bf16.msra.mxu0 %v898
  %1058 = vmatprep.subr.bf16.mxu0 0
  %1059 = vmatpush1.bf16.msra.mxu0 %v899
  %1060 = vmatprep.subr.bf16.mxu0 0
  %1061 = vmatpush1.bf16.msra.mxu0 %v900
  %1062 = vmatprep.subr.bf16.mxu0 0
  %1063 = vmatpush1.bf16.msra.mxu0 %v901
  %1064 = vmatprep.subr.bf16.mxu0 0
  %1065 = vmatpush1.bf16.msra.mxu0 0
  %1066 = vmatprep.subr.bf16.mxu0 0
  %1067 = vmatpush1.bf16.msra.mxu0 0
  %1068 = vmatprep.subr.bf16.mxu0 0
  %1069 = vmatpush1.bf16.msra.mxu0 0
  %1070 = vmatprep.subr.bf16.mxu0 0
  %1071 = vmatpush1.bf16.msra.mxu0 0
  %1072 = vmatprep.subr.bf16.mxu0 0
  %1073 = vmatpush1.bf16.msra.mxu0 0
  %1074 = vmatprep.subr.bf16.mxu0 0
  %1075 = vmatpush1.bf16.msra.mxu0 0
  %1076 = vmatprep.subr.bf16.mxu0 0
  %1077 = vmatpush1.bf16.msra.mxu0 0
  %1078 = vmatprep.subr.bf16.mxu0 0
  %1079 = vmatpush1.bf16.msra.mxu0 0
  %1080 = vmatprep.mubr.bf16.mxu0 0
  %1081 = vmatmul.mubr.bf16.gmra.mrb[0].mxu0 %v1047
  %v1082 = vpop.f32.mrb[0].mxu0
  %v1083 = vadd.f32 0.0, %v1082
  %v1084 = vpop.f32.mrb[0].mxu0
  %v1085 = vpop.f32.mrb[0].mxu0
  %v1086 = vpop.f32.mrb[0].mxu0
  %1087 = vdwg.mxu0
  %v1088 = vadd.f32 %v1045, %v1083
  %v1089 = vtanh.pop %v1088
  %1090 = vst [vmem:[#allocation4] sm:$0xff] %v1089
  %v1091 = vld [vmem:[%s462] sm:$0xff]
  %v1092 = vld [vmem:[#allocation4] sm:$0xff]
  %v1093 = vpack.c.bf16 %v1092, %v1092
  %1094 = vmatprep.subr.bf16.mxu0 0
  %1095 = vmatpush1.bf16.msra.mxu0 %v894
  %1096 = vmatprep.subr.bf16.mxu0 0
  %1097 = vmatpush1.bf16.msra.mxu0 %v895
  %1098 = vmatprep.subr.bf16.mxu0 0
  %1099 = vmatpush1.bf16.msra.mxu0 %v896
  %1100 = vmatprep.subr.bf16.mxu0 0
  %1101 = vmatpush1.bf16.msra.mxu0 %v897
  %1102 = vmatprep.subr.bf16.mxu0 0
  %1103 = vmatpush1.bf16.msra.mxu0 %v898
  %1104 = vmatprep.subr.bf16.mxu0 0
  %1105 = vmatpush1.bf16.msra.mxu0 %v899
  %1106 = vmatprep.subr.bf16.mxu0 0
  %1107 = vmatpush1.bf16.msra.mxu0 %v900
  %1108 = vmatprep.subr.bf16.mxu0 0
  %1109 = vmatpush1.bf16.msra.mxu0 %v901
  %1110 = vmatprep.subr.bf16.mxu0 0
  %1111 = vmatpush1.bf16.msra.mxu0 0
  %1112 = vmatprep.subr.bf16.mxu0 0
  %1113 = vmatpush1.bf16.msra.mxu0 0
  %1114 = vmatprep.subr.bf16.mxu0 0
  %1115 = vmatpush1.bf16.msra.mxu0 0
  %1116 = vmatprep.subr.bf16.mxu0 0
  %1117 = vmatpush1.bf16.msra.mxu0 0
  %1118 = vmatprep.subr.bf16.mxu0 0
  %1119 = vmatpush1.bf16.msra.mxu0 0
  %1120 = vmatprep.subr.bf16.mxu0 0
  %1121 = vmatpush1.bf16.msra.mxu0 0
  %1122 = vmatprep.subr.bf16.mxu0 0
  %1123 = vmatpush1.bf16.msra.mxu0 0
  %1124 = vmatprep.subr.bf16.mxu0 0
  %1125 = vmatpush1.bf16.msra.mxu0 0
  %1126 = vmatprep.mubr.bf16.mxu0 0
  %1127 = vmatmul.mubr.bf16.gmra.mrb[0].mxu0 %v1093
  %v1128 = vpop.f32.mrb[0].mxu0
  %v1129 = vadd.f32 0.0, %v1128
  %v1130 = vpop.f32.mrb[0].mxu0
  %v1131 = vpop.f32.mrb[0].mxu0
  %v1132 = vpop.f32.mrb[0].mxu0
  %1133 = vdwg.mxu0
  %v1134 = vadd.f32 %v1091, %v1129
  %v1135 = vtanh.pop %v1134
  %1136 = vst [vmem:[#allocation4] sm:$0xff] %v1135
  %v1137 = vld [vmem:[%s511] sm:$0xff]
  %v1138 = vld [vmem:[#allocation4] sm:$0xff]
  %v1139 = vpack.c.bf16 %v1138, %v1138
  %1140 = vmatprep.subr.bf16.mxu0 0
  %1141 = vmatpush1.bf16.msra.mxu0 %v894
  %1142 = vmatprep.subr.bf16.mxu0 0
  %1143 = vmatpush1.bf16.msra.mxu0 %v895
  %1144 = vmatprep.subr.bf16.mxu0 0
  %1145 = vmatpush1.bf16.msra.mxu0 %v896
  %1146 = vmatprep.subr.bf16.mxu0 0
  %1147 = vmatpush1.bf16.msra.mxu0 %v897
  %1148 = vmatprep.subr.bf16.mxu0 0
  %1149 = vmatpush1.bf16.msra.mxu0 %v898
  %1150 = vmatprep.subr.bf16.mxu0 0
  %1151 = vmatpush1.bf16.msra.mxu0 %v899
  %1152 = vmatprep.subr.bf16.mxu0 0
  %1153 = vmatpush1.bf16.msra.mxu0 %v900
  %1154 = vmatprep.subr.bf16.mxu0 0
  %1155 = vmatpush1.bf16.msra.mxu0 %v901
  %1156 = vmatprep.subr.bf16.mxu0 0
  %1157 = vmatpush1.bf16.msra.mxu0 0
  %1158 = vmatprep.subr.bf16.mxu0 0
  %1159 = vmatpush1.bf16.msra.mxu0 0
  %1160 = vmatprep.subr.bf16.mxu0 0
  %1161 = vmatpush1.bf16.msra.mxu0 0
  %1162 = vmatprep.subr.bf16.mxu0 0
  %1163 = vmatpush1.bf16.msra.mxu0 0
  %1164 = vmatprep.subr.bf16.mxu0 0
  %1165 = vmatpush1.bf16.msra.mxu0 0
  %1166 = vmatprep.subr.bf16.mxu0 0
  %1167 = vmatpush1.bf16.msra.mxu0 0
  %1168 = vmatprep.subr.bf16.mxu0 0
  %1169 = vmatpush1.bf16.msra.mxu0 0
  %1170 = vmatprep.subr.bf16.mxu0 0
  %1171 = vmatpush1.bf16.msra.mxu0 0
  %1172 = vmatprep.mubr.bf16.mxu0 0
  %1173 = vmatmul.mubr.bf16.gmra.mrb[0].mxu0 %v1139
  %v1174 = vpop.f32.mrb[0].mxu0
  %v1175 = vadd.f32 0.0, %v1174
  %v1176 = vpop.f32.mrb[0].mxu0
  %v1177 = vpop.f32.mrb[0].mxu0
  %v1178 = vpop.f32.mrb[0].mxu0
  %1179 = vdwg.mxu0
  %v1180 = vadd.f32 %v1137, %v1175
  %v1181 = vtanh.pop %v1180
  %1182 = vst [vmem:[#allocation4] sm:$0xff] %v1181
  %v1183 = vld [vmem:[%s560] sm:$0xff]
  %v1184 = vld [vmem:[#allocation4] sm:$0xff]
  %v1185 = vpack.c.bf16 %v1184, %v1184
  %1186 = vmatprep.subr.bf16.mxu0 0
  %1187 = vmatpush1.bf16.msra.mxu0 %v894
  %1188 = vmatprep.subr.bf16.mxu0 0
  %1189 = vmatpush1.bf16.msra.mxu0 %v895
  %1190 = vmatprep.subr.bf16.mxu0 0
  %1191 = vmatpush1.bf16.msra.mxu0 %v896
  %1192 = vmatprep.subr.bf16.mxu0 0
  %1193 = vmatpush1.bf16.msra.mxu0 %v897
  %1194 = vmatprep.subr.bf16.mxu0 0
  %1195 = vmatpush1.bf16.msra.mxu0 %v898
  %1196 = vmatprep.subr.bf16.mxu0 0
  %1197 = vmatpush1.bf16.msra.mxu0 %v899
  %1198 = vmatprep.subr.bf16.mxu0 0
  %1199 = vmatpush1.bf16.msra.mxu0 %v900
  %1200 = vmatprep.subr.bf16.mxu0 0
  %1201 = vmatpush1.bf16.msra.mxu0 %v901
  %1202 = vmatprep.subr.bf16.mxu0 0
  %1203 = vmatpush1.bf16.msra.mxu0 0
  %1204 = vmatprep.subr.bf16.mxu0 0
  %1205 = vmatpush1.bf16.msra.mxu0 0
  %1206 = vmatprep.subr.bf16.mxu0 0
  %1207 = vmatpush1.bf16.msra.mxu0 0
  %1208 = vmatprep.subr.bf16.mxu0 0
  %1209 = vmatpush1.bf16.msra.mxu0 0
  %1210 = vmatprep.subr.bf16.mxu0 0
  %1211 = vmatpush1.bf16.msra.mxu0 0
  %1212 = vmatprep.subr.bf16.mxu0 0
  %1213 = vmatpush1.bf16.msra.mxu0 0
  %1214 = vmatprep.subr.bf16.mxu0 0
  %1215 = vmatpush1.bf16.msra.mxu0 0
  %1216 = vmatprep.subr.bf16.mxu0 0
  %1217 = vmatpush1.bf16.msra.mxu0 0
  %1218 = vmatprep.mubr.bf16.mxu0 0
  %1219 = vmatmul.mubr.bf16.gmra.mrb[0].mxu0 %v1185
  %v1220 = vpop.f32.mrb[0].mxu0
  %v1221 = vadd.f32 0.0, %v1220
  %v1222 = vpop.f32.mrb[0].mxu0
  %v1223 = vpop.f32.mrb[0].mxu0
  %v1224 = vpop.f32.mrb[0].mxu0
  %1225 = vdwg.mxu0
  %v1226 = vadd.f32 %v1183, %v1221
  %v1227 = vtanh.pop %v1226
  %1228 = vst [vmem:[#allocation4] sm:$0xff] %v1227
  %v1229 = vld [vmem:[%s609] sm:$0xff]
  %v1230 = vld [vmem:[#allocation4] sm:$0xff]
  %v1231 = vpack.c.bf16 %v1230, %v1230
  %1232 = vmatprep.subr.bf16.mxu0 0
  %1233 = vmatpush1.bf16.msra.mxu0 %v894
  %1234 = vmatprep.subr.bf16.mxu0 0
  %1235 = vmatpush1.bf16.msra.mxu0 %v895
  %1236 = vmatprep.subr.bf16.mxu0 0
  %1237 = vmatpush1.bf16.msra.mxu0 %v896
  %1238 = vmatprep.subr.bf16.mxu0 0
  %1239 = vmatpush1.bf16.msra.mxu0 %v897
  %1240 = vmatprep.subr.bf16.mxu0 0
  %1241 = vmatpush1.bf16.msra.mxu0 %v898
  %1242 = vmatprep.subr.bf16.mxu0 0
  %1243 = vmatpush1.bf16.msra.mxu0 %v899
  %1244 = vmatprep.subr.bf16.mxu0 0
  %1245 = vmatpush1.bf16.msra.mxu0 %v900
  %1246 = vmatprep.subr.bf16.mxu0 0
  %1247 = vmatpush1.bf16.msra.mxu0 %v901
  %1248 = vmatprep.subr.bf16.mxu0 0
  %1249 = vmatpush1.bf16.msra.mxu0 0
  %1250 = vmatprep.subr.bf16.mxu0 0
  %1251 = vmatpush1.bf16.msra.mxu0 0
  %1252 = vmatprep.subr.bf16.mxu0 0
  %1253 = vmatpush1.bf16.msra.mxu0 0
  %1254 = vmatprep.subr.bf16.mxu0 0
  %1255 = vmatpush1.bf16.msra.mxu0 0
  %1256 = vmatprep.subr.bf16.mxu0 0
  %1257 = vmatpush1.bf16.msra.mxu0 0
  %1258 = vmatprep.subr.bf16.mxu0 0
  %1259 = vmatpush1.bf16.msra.mxu0 0
  %1260 = vmatprep.subr.bf16.mxu0 0
  %1261 = vmatpush1.bf16.msra.mxu0 0
  %1262 = vmatprep.subr.bf16.mxu0 0
  %1263 = vmatpush1.bf16.msra.mxu0 0
  %1264 = vmatprep.mubr.bf16.mxu0 0
  %1265 = vmatmul.mubr.bf16.gmra.mrb[0].mxu0 %v1231
  %v1266 = vpop.f32.mrb[0].mxu0
  %v1267 = vadd.f32 0.0, %v1266
  %v1268 = vpop.f32.mrb[0].mxu0
  %v1269 = vpop.f32.mrb[0].mxu0
  %v1270 = vpop.f32.mrb[0].mxu0
  %1271 = vdwg.mxu0
  %v1272 = vadd.f32 %v1229, %v1267
  %v1273 = vtanh.pop %v1272
  %1274 = vst [vmem:[#allocation4] sm:$0xff] %v1273
  %v1275 = vld [vmem:[#allocation4] sm:$0xff]
  %1276 = vst [vmem:[%s7] sm:$0xff] %v1275
  // Predicated region
  $region30: #{rnn_model_forward.2} parent=0 // pred_check
    _
  $region31: #{rnn_model_forward.2} parent=0 // pred_check_branch
    %1278 = sbr.rel (0) target = $region33
  $region32: #{rnn_model_forward.2} parent=0 // pred_region
    _
  $region33: #{rnn_model_forward.2} parent=0 // pred_fallthru
    _
  // Predicated region
  $region34: #{rnn_model_forward.2} parent=0 // pred_check
    _
  $region35: #{rnn_model_forward.2} parent=0 // pred_check_branch
    %1280 = sbr.rel (0) target = $region37
  $region36: #{rnn_model_forward.2} parent=0 // pred_region
    _
  $region37: #{rnn_model_forward.2} parent=0 // pred_fallthru
    _

</llo_original>
